<compile_context>
chip_gen: v6e
topology: v6e:2x2x1
jax: 0.10.0
libtpu: 0.0.40
codegen_flags: <defaults>
</compile_context>

<pallas_src>
import functools
import math

import jax
import jax.numpy as jnp
from jax.experimental import pallas as pl
from jax.experimental.pallas import tpu as pltpu


def _round_up(x, m):
    return (x + m - 1) // m * m


# ---------------------------------------------------------------------------
# Pallas kernel: in-VMEM staging + (tap-accumulate | im2col) conv + bias
# ---------------------------------------------------------------------------
def _conv_kernel(x_ref, w_ref, b_ref, o_ref, stage_ref, *,
                 offsets, m_tile, hw, nb, use_im2col):
    """Processes `nb` images per grid step.

    x_ref:     [nb, C, hw]        raw activations (flattened spatial)
    w_ref:     direct: [T, Cout, Ck] f32 ; im2col: [Cout, T*Ck] compute dtype
    b_ref:     [Cout, 1] f32      effective bias (time channel folded in)
    o_ref:     [nb, Cout, m_tile] lane-dense output (m_tile % 128 == 0)
    stage_ref: [Ck, L]            VMEM staging, L % 128 == 0, L >= m_tile+max_off
    """
    # Zero the staging buffer each step so the lane tail [hw:L) (only ever read
    # by the wrap columns that the epilogue trims) is well defined on every
    # core, even when the "parallel" grid axis is split across TensorCores.
    stage_ref[...] = jnp.zeros_like(stage_ref)
    c_in = x_ref.shape[1]

    for b in range(nb):                      # static unroll, nb small
        # Stage image b: the flatten / tail-pad / cast is fused here instead
        # of being an extra HBM pass.
        stage_ref[:c_in, :hw] = x_ref[b].astype(stage_ref.dtype)

        if use_im2col:
            # Patch matrix in VMEM (pack-aligned sublane boundaries) + one
            # deep-K MXU matmul.  Chosen when Cout is MXU-bound.
            patches = jnp.concatenate(
                [stage_ref[:, off:off + m_tile] for off in offsets], axis=0)
            acc = jnp.dot(w_ref[...], patches,
                          preferred_element_type=jnp.float32)
        else:
            # Direct path: accumulate over taps, no patch materialization.
            acc = None
            for kk, off in enumerate(offsets):
                part = jnp.dot(w_ref[kk], stage_ref[:, off:off + m_tile],
                               preferred_element_type=jnp.float32)
                acc = part if acc is None else acc + part

        o_ref[b] = (acc + b_ref[...]).astype(o_ref.dtype)


# ---------------------------------------------------------------------------
# RandConcatConv2d forward
# ---------------------------------------------------------------------------
def rand_concat_conv2d(t, x, weight, bias, *, stride=1, padding=0, dilation=1,
                       compute_dtype=jnp.bfloat16, path="auto",
                       batch_block=None):
    """t: scalar, x: [N, Cin, H, W], weight: [Cout, Cin+1, KH, KW] -> NCHW.

    Matches Conv2d(cat([t*ones, x], 1)).  `compute_dtype` sets the MXU operand
    dtype of the im2col path; the direct (tap-accumulate) path is f32.
    """
    N, Cin, H, W = x.shape
    Cout, Cw, KH, KW = weight.shape
    assert Cw == Cin + 1, "weight must have Cin+1 input channels (time ch.)"

    if padding == 0:
        # Constant time channel folds exactly into the bias for VALID conv.
        w_x = weight[:, 1:]                                        # [Cout,Cin,KH,KW]
        b_eff = bias + t * jnp.sum(weight[:, 0], axis=(-1, -2))    # [Cout]
        xc = x
    else:
        # Matches PyTorch: concat the time channel, then zero-pad spatially.
        tt = jnp.ones((N, 1, H, W), x.dtype) * t
        xc = jnp.concatenate([tt, x], axis=1)
        xc = jnp.pad(xc, ((0, 0), (0, 0),
                          (padding, padding), (padding, padding)))
        w_x = weight
        b_eff = bias

    C2 = w_x.shape[1]
    _, _, Hp, Wp = xc.shape
    hw = Hp * Wp

    OH1 = Hp - dilation * (KH - 1)          # stride-1 output rows
    OW1 = Wp - dilation * (KW - 1)          # stride-1 output cols
    OH = (OH1 - 1) // stride + 1
    OW = (OW1 - 1) // stride + 1
    T = KH * KW

    # Lane-dense compute width and lane-aligned staging length.
    m_tile = _round_up(OH1 * Wp, 128)
    max_off = dilation * ((KH - 1) * Wp + (KW - 1))
    L = _round_up(m_tile + max_off, 128)

    if path == "auto":
        use_im2col = Cout >= 128            # big Cout => MXU-bound => deep-K GEMM
    else:
        use_im2col = (path == "im2col")

    xr = xc.reshape(N, C2, hw)              # free reshape (stays in HBM)

    if use_im2col:
        # Pack-aligned channel count so the in-kernel sublane concat of the
        # KH*KW slabs needs no relayout (16 rows for bf16, 8 for f32).
        pack = max(8, 32 // jnp.dtype(compute_dtype).itemsize)
        Ck = _round_up(C2, pack)
        if Ck > C2:
            xr = jnp.pad(xr, ((0, 0), (0, Ck - C2), (0, 0)))
        wk = jnp.pad(w_x, ((0, 0), (0, Ck - C2), (0, 0), (0, 0)))
        wk = wk.transpose(0, 2, 3, 1).reshape(Cout, T * Ck)       # (kh,kw,c) cols
        wk = wk.astype(compute_dtype)
        w_spec = pl.BlockSpec((Cout, T * Ck), lambda i: (0, 0))
        stage_dtype = compute_dtype
        c_block = Ck
    else:
        # Direct path: f32 operands; taps on the leading weight axis so each
        # per-tap slab is a plain leading-index load (no lane slicing).
        Ck = _round_up(C2, 8)
        wk = jnp.pad(w_x, ((0, 0), (0, Ck - C2), (0, 0), (0, 0)))
        wk = wk.transpose(2, 3, 0, 1).reshape(T, Cout, Ck).astype(jnp.float32)
        w_spec = pl.BlockSpec((T, Cout, Ck), lambda i: (0, 0, 0))
        stage_dtype = jnp.float32
        c_block = C2

    b2 = b_eff.reshape(Cout, 1).astype(jnp.float32)

    # Batch several images per grid step (amortize per-step overhead) while
    # keeping the double-buffered blocks comfortably inside scoped VMEM.
    out_itemsize = jnp.dtype(x.dtype).itemsize
    if batch_block is None:
        per_img = (c_block * hw * jnp.dtype(xr.dtype).itemsize
                   + Cout * m_tile * out_itemsize)
        batch_block = max(1, min(N, (4 << 20) // max(per_img, 1), 16))
    Nb = int(max(1, min(batch_block, N)))
    N_pad = _round_up(N, Nb)
    if N_pad != N:
        xr = jnp.pad(xr, ((0, N_pad - N), (0, 0), (0, 0)))

    offsets = tuple(dilation * (kh * Wp + kw)
                    for kh in range(KH) for kw in range(KW))

    kernel = functools.partial(_conv_kernel, offsets=offsets, m_tile=m_tile,
                               hw=hw, nb=Nb, use_im2col=use_im2col)

    flops = 2 * N_pad * Cout * T * Ck * m_tile
    bytes_accessed = (xr.size * xr.dtype.itemsize
                      + wk.size * wk.dtype.itemsize
                      + b2.size * 4
                      + N_pad * Cout * m_tile * out_itemsize)

    out_full = pl.pallas_call(
        kernel,
        out_shape=jax.ShapeDtypeStruct((N_pad, Cout, m_tile), x.dtype),
        grid=(N_pad // Nb,),
        in_specs=[
            pl.BlockSpec((Nb, c_block, hw), lambda i: (i, 0, 0)),  # activations
            w_spec,                                                # weight (resident)
            pl.BlockSpec((Cout, 1), lambda i: (0, 0)),             # bias (resident)
        ],
        out_specs=pl.BlockSpec((Nb, Cout, m_tile), lambda i: (i, 0, 0)),
        scratch_shapes=[pltpu.VMEM((Ck, L), stage_dtype)],
        compiler_params=pltpu.CompilerParams(
            dimension_semantics=("parallel",)),
        cost_estimate=pl.CostEstimate(flops=int(flops), transcendentals=0,
                                      bytes_accessed=int(bytes_accessed)),
    )(xr, wk, b2)

    # Cheap epilogue on the small output: trim wrap columns, reshape to NCHW
    # (contiguous -> free), subsample for stride.
    out = out_full[:N, :, :OH1 * Wp].reshape(N, Cout, OH1, Wp)
    out = out[:, :, ::stride, ::stride][:, :, :OH, :OW]
    return out


# ---------------------------------------------------------------------------
# Deterministic parameter init (PyTorch Conv2d default: U(-1/sqrt(fan_in), +))
# ---------------------------------------------------------------------------
def init_params(key, dim_in, dim_out, ksize):
    cin = dim_in + 1                      # +1 for the time channel
    fan_in = cin * ksize * ksize
    bound = 1.0 / math.sqrt(fan_in)
    kw_key, kb_key = jax.random.split(key)
    weight = jax.random.uniform(kw_key, (dim_out, cin, ksize, ksize),
                                minval=-bound, maxval=bound, dtype=jnp.float32)
    bias = jax.random.uniform(kb_key, (dim_out,),
                              minval=-bound, maxval=bound, dtype=jnp.float32)
    return weight, bias


if __name__ == "__main__":
    key = jax.random.PRNGKey(0)
    kx, kp = jax.random.split(key)

    # Small shapes consistent with the module: batch=2, dim_in=4, spatial 16x16.
    dim_in, dim_out, ksize = 4, 8, 3
    N, H, W = 2, 16, 16
    x = jax.random.normal(kx, (N, dim_in, H, W), dtype=jnp.float32)
    t = jnp.float32(0.5)

    weight, bias = init_params(kp, dim_in, dim_out, ksize)

    fwd = jax.jit(rand_concat_conv2d,
                  static_argnames=("stride", "padding", "dilation",
                                   "compute_dtype", "path", "batch_block"))

    def ref_conv(t, x, weight, bias, stride=1, padding=0):
        tt = jnp.ones((x.shape[0], 1, x.shape[2], x.shape[3]), jnp.float32) * t
        ttx = jnp.concatenate([tt, x], axis=1)
        out = jax.lax.conv_general_dilated(
            ttx, weight, window_strides=(stride, stride),
            padding=((padding, padding), (padding, padding)),
            dimension_numbers=("NCHW", "OIHW", "NCHW"))
        return out + bias[None, :, None, None]

    ref0 = ref_conv(t, x, weight, bias)

    # 1) Default path (direct tap-accumulate, f32 operands) — exact check.
    out_dir = jax.block_until_ready(fwd(t, x, weight, bias))
    assert out_dir.shape == (N, dim_out, 14, 14), out_dir.shape
    assert jnp.allclose(out_dir, ref0, atol=1e-4, rtol=1e-4)

    # 2) im2col path, bf16 MXU operands (f32 accumulation) — loose check.
    out_im_bf16 = jax.block_until_ready(fwd(t, x, weight, bias, path="im2col"))
    assert jnp.allclose(out_im_bf16, ref0, atol=1e-1, rtol=1e-1)

    # 3) im2col path, f32 — exact check.
    out_im_f32 = jax.block_until_ready(
        fwd(t, x, weight, bias, path="im2col", compute_dtype=jnp.float32))
    assert jnp.allclose(out_im_f32, ref0, atol=1e-4, rtol=1e-4)

    # 4) padding=1 (time channel concatenated + zero padded, torch semantics).
    out_pad = jax.block_until_ready(fwd(t, x, weight, bias, padding=1))
    ref_pad = ref_conv(t, x, weight, bias, padding=1)
    assert out_pad.shape == (N, dim_out, 16, 16), out_pad.shape
    assert jnp.allclose(out_pad, ref_pad, atol=1e-4, rtol=1e-4)

    # 5) stride=2.
    out_s2 = jax.block_until_ready(fwd(t, x, weight, bias, stride=2))
    ref_s2 = ref_conv(t, x, weight, bias, stride=2)
    assert out_s2.shape == (N, dim_out, 7, 7), out_s2.shape
    assert jnp.allclose(out_s2, ref_s2, atol=1e-4, rtol=1e-4)

    print("KERNEL_OK")
</pallas_src>

<mosaic_0001>
module attributes {stable_mosaic.version = 11 : i64} {
  func.func @_conv_kernel(%arg0: i32, %arg1: memref<2x4x256xf32, #tpu.memory_space<vmem>>, %arg2: memref<9x8x8xf32, #tpu.memory_space<vmem>>, %arg3: memref<8x1xf32, #tpu.memory_space<vmem>>, %arg4: memref<2x8x256xf32, #tpu.memory_space<vmem>>, %arg5: memref<8x384xf32, #tpu.memory_space<vmem>>) attributes {dimension_semantics = [#tpu.dimension_semantics<parallel>], iteration_bounds = array<i64: 1>, scalar_prefetch = 0 : i64, scratch_operands = 1 : i64, tpu.core_type = #tpu.core_type<tc>, window_params = [{transform_indices = @transform_0, window_bounds = array<i64: 2, 4, 256>}, {pipeline_mode = #tpu.pipeline_mode<synchronous>, transform_indices = @transform_1, window_bounds = array<i64: 9, 8, 8>}, {pipeline_mode = #tpu.pipeline_mode<synchronous>, transform_indices = @transform_2, window_bounds = array<i64: 8, 1>}, {transform_indices = @transform_3, window_bounds = array<i64: 2, 8, 256>}]} {
    %cst = arith.constant 0.000000e+00 : f32
    %0 = vector.broadcast %cst : f32 to vector<8x384xf32>
    %c0 = arith.constant 0 : index
    %c0_0 = arith.constant 0 : index
    %1 = vector.load %arg5[%c0, %c0_0] : memref<8x384xf32, #tpu.memory_space<vmem>>, vector<8x384xf32>
    tpu.vector_store %arg5[%c0, %c0_0], %0 {strides = array<i32>} : memref<8x384xf32, #tpu.memory_space<vmem>>, vector<8x384xf32>,
    %c0_1 = arith.constant 0 : index
    %c0_2 = arith.constant 0 : index
    %c0_3 = arith.constant 0 : index
    %2 = vector.load %arg1[%c0_1, %c0_2, %c0_3] : memref<2x4x256xf32, #tpu.memory_space<vmem>>, vector<1x4x256xf32>
    %3 = vector.shape_cast %2 : vector<1x4x256xf32> to vector<4x256xf32>
    %c0_4 = arith.constant 0 : index
    %c0_5 = arith.constant 0 : index
    %4 = vector.load %arg5[%c0_4, %c0_5] : memref<8x384xf32, #tpu.memory_space<vmem>>, vector<4x256xf32>
    tpu.vector_store %arg5[%c0_4, %c0_5], %3 {strides = array<i32>} : memref<8x384xf32, #tpu.memory_space<vmem>>, vector<4x256xf32>,
    %c0_6 = arith.constant 0 : index
    %c0_7 = arith.constant 0 : index
    %c0_8 = arith.constant 0 : index
    %5 = vector.load %arg2[%c0_6, %c0_7, %c0_8] : memref<9x8x8xf32, #tpu.memory_space<vmem>>, vector<1x8x8xf32>
    %6 = vector.shape_cast %5 : vector<1x8x8xf32> to vector<8x8xf32>
    %c0_9 = arith.constant 0 : index
    %c0_10 = arith.constant 0 : index
    %7 = vector.load %arg5[%c0_9, %c0_10] : memref<8x384xf32, #tpu.memory_space<vmem>>, vector<8x256xf32>
    %cst_11 = arith.constant dense<0.000000e+00> : vector<8x256xf32>
    %8 = tpu.matmul %6, %7, %cst_11 {dimension_numbers = #tpu.dot_dimension_numbers<[1], [0], [0], [1], [0, 0, 1, 1], [], []>} : vector<8x8xf32>, vector<8x256xf32>, vector<8x256xf32> -> vector<8x256xf32>
    %c1 = arith.constant 1 : index
    %c0_12 = arith.constant 0 : index
    %c0_13 = arith.constant 0 : index
    %9 = vector.load %arg2[%c1, %c0_12, %c0_13] : memref<9x8x8xf32, #tpu.memory_space<vmem>>, vector<1x8x8xf32>
    %10 = vector.shape_cast %9 : vector<1x8x8xf32> to vector<8x8xf32>
    %c0_14 = arith.constant 0 : index
    %c1_15 = arith.constant 1 : index
    %11 = vector.load %arg5[%c0_14, %c1_15] : memref<8x384xf32, #tpu.memory_space<vmem>>, vector<8x256xf32>
    %cst_16 = arith.constant dense<0.000000e+00> : vector<8x256xf32>
    %12 = tpu.matmul %10, %11, %cst_16 {dimension_numbers = #tpu.dot_dimension_numbers<[1], [0], [0], [1], [0, 0, 1, 1], [], []>} : vector<8x8xf32>, vector<8x256xf32>, vector<8x256xf32> -> vector<8x256xf32>
    %13 = arith.addf %8, %12 : vector<8x256xf32>
    %c2 = arith.constant 2 : index
    %c0_17 = arith.constant 0 : index
    %c0_18 = arith.constant 0 : index
    %14 = vector.load %arg2[%c2, %c0_17, %c0_18] : memref<9x8x8xf32, #tpu.memory_space<vmem>>, vector<1x8x8xf32>
    %15 = vector.shape_cast %14 : vector<1x8x8xf32> to vector<8x8xf32>
    %c0_19 = arith.constant 0 : index
    %c2_20 = arith.constant 2 : index
    %16 = vector.load %arg5[%c0_19, %c2_20] : memref<8x384xf32, #tpu.memory_space<vmem>>, vector<8x256xf32>
    %cst_21 = arith.constant dense<0.000000e+00> : vector<8x256xf32>
    %17 = tpu.matmul %15, %16, %cst_21 {dimension_numbers = #tpu.dot_dimension_numbers<[1], [0], [0], [1], [0, 0, 1, 1], [], []>} : vector<8x8xf32>, vector<8x256xf32>, vector<8x256xf32> -> vector<8x256xf32>
    %18 = arith.addf %13, %17 : vector<8x256xf32>
    %c3 = arith.constant 3 : index
    %c0_22 = arith.constant 0 : index
    %c0_23 = arith.constant 0 : index
    %19 = vector.load %arg2[%c3, %c0_22, %c0_23] : memref<9x8x8xf32, #tpu.memory_space<vmem>>, vector<1x8x8xf32>
    %20 = vector.shape_cast %19 : vector<1x8x8xf32> to vector<8x8xf32>
    %c0_24 = arith.constant 0 : index
    %c16 = arith.constant 16 : index
    %21 = vector.load %arg5[%c0_24, %c16] : memref<8x384xf32, #tpu.memory_space<vmem>>, vector<8x256xf32>
    %cst_25 = arith.constant dense<0.000000e+00> : vector<8x256xf32>
    %22 = tpu.matmul %20, %21, %cst_25 {dimension_numbers = #tpu.dot_dimension_numbers<[1], [0], [0], [1], [0, 0, 1, 1], [], []>} : vector<8x8xf32>, vector<8x256xf32>, vector<8x256xf32> -> vector<8x256xf32>
    %23 = arith.addf %18, %22 : vector<8x256xf32>
    %c4 = arith.constant 4 : index
    %c0_26 = arith.constant 0 : index
    %c0_27 = arith.constant 0 : index
    %24 = vector.load %arg2[%c4, %c0_26, %c0_27] : memref<9x8x8xf32, #tpu.memory_space<vmem>>, vector<1x8x8xf32>
    %25 = vector.shape_cast %24 : vector<1x8x8xf32> to vector<8x8xf32>
    %c0_28 = arith.constant 0 : index
    %c17 = arith.constant 17 : index
    %26 = vector.load %arg5[%c0_28, %c17] : memref<8x384xf32, #tpu.memory_space<vmem>>, vector<8x256xf32>
    %cst_29 = arith.constant dense<0.000000e+00> : vector<8x256xf32>
    %27 = tpu.matmul %25, %26, %cst_29 {dimension_numbers = #tpu.dot_dimension_numbers<[1], [0], [0], [1], [0, 0, 1, 1], [], []>} : vector<8x8xf32>, vector<8x256xf32>, vector<8x256xf32> -> vector<8x256xf32>
    %28 = arith.addf %23, %27 : vector<8x256xf32>
    %c5 = arith.constant 5 : index
    %c0_30 = arith.constant 0 : index
    %c0_31 = arith.constant 0 : index
    %29 = vector.load %arg2[%c5, %c0_30, %c0_31] : memref<9x8x8xf32, #tpu.memory_space<vmem>>, vector<1x8x8xf32>
    %30 = vector.shape_cast %29 : vector<1x8x8xf32> to vector<8x8xf32>
    %c0_32 = arith.constant 0 : index
    %c18 = arith.constant 18 : index
    %31 = vector.load %arg5[%c0_32, %c18] : memref<8x384xf32, #tpu.memory_space<vmem>>, vector<8x256xf32>
    %cst_33 = arith.constant dense<0.000000e+00> : vector<8x256xf32>
    %32 = tpu.matmul %30, %31, %cst_33 {dimension_numbers = #tpu.dot_dimension_numbers<[1], [0], [0], [1], [0, 0, 1, 1], [], []>} : vector<8x8xf32>, vector<8x256xf32>, vector<8x256xf32> -> vector<8x256xf32>
    %33 = arith.addf %28, %32 : vector<8x256xf32>
    %c6 = arith.constant 6 : index
    %c0_34 = arith.constant 0 : index
    %c0_35 = arith.constant 0 : index
    %34 = vector.load %arg2[%c6, %c0_34, %c0_35] : memref<9x8x8xf32, #tpu.memory_space<vmem>>, vector<1x8x8xf32>
    %35 = vector.shape_cast %34 : vector<1x8x8xf32> to vector<8x8xf32>
    %c0_36 = arith.constant 0 : index
    %c32 = arith.constant 32 : index
    %36 = vector.load %arg5[%c0_36, %c32] : memref<8x384xf32, #tpu.memory_space<vmem>>, vector<8x256xf32>
    %cst_37 = arith.constant dense<0.000000e+00> : vector<8x256xf32>
    %37 = tpu.matmul %35, %36, %cst_37 {dimension_numbers = #tpu.dot_dimension_numbers<[1], [0], [0], [1], [0, 0, 1, 1], [], []>} : vector<8x8xf32>, vector<8x256xf32>, vector<8x256xf32> -> vector<8x256xf32>
    %38 = arith.addf %33, %37 : vector<8x256xf32>
    %c7 = arith.constant 7 : index
    %c0_38 = arith.constant 0 : index
    %c0_39 = arith.constant 0 : index
    %39 = vector.load %arg2[%c7, %c0_38, %c0_39] : memref<9x8x8xf32, #tpu.memory_space<vmem>>, vector<1x8x8xf32>
    %40 = vector.shape_cast %39 : vector<1x8x8xf32> to vector<8x8xf32>
    %c0_40 = arith.constant 0 : index
    %c33 = arith.constant 33 : index
    %41 = vector.load %arg5[%c0_40, %c33] : memref<8x384xf32, #tpu.memory_space<vmem>>, vector<8x256xf32>
    %cst_41 = arith.constant dense<0.000000e+00> : vector<8x256xf32>
    %42 = tpu.matmul %40, %41, %cst_41 {dimension_numbers = #tpu.dot_dimension_numbers<[1], [0], [0], [1], [0, 0, 1, 1], [], []>} : vector<8x8xf32>, vector<8x256xf32>, vector<8x256xf32> -> vector<8x256xf32>
    %43 = arith.addf %38, %42 : vector<8x256xf32>
    %c8 = arith.constant 8 : index
    %c0_42 = arith.constant 0 : index
    %c0_43 = arith.constant 0 : index
    %44 = vector.load %arg2[%c8, %c0_42, %c0_43] : memref<9x8x8xf32, #tpu.memory_space<vmem>>, vector<1x8x8xf32>
    %45 = vector.shape_cast %44 : vector<1x8x8xf32> to vector<8x8xf32>
    %c0_44 = arith.constant 0 : index
    %c34 = arith.constant 34 : index
    %46 = vector.load %arg5[%c0_44, %c34] : memref<8x384xf32, #tpu.memory_space<vmem>>, vector<8x256xf32>
    %cst_45 = arith.constant dense<0.000000e+00> : vector<8x256xf32>
    %47 = tpu.matmul %45, %46, %cst_45 {dimension_numbers = #tpu.dot_dimension_numbers<[1], [0], [0], [1], [0, 0, 1, 1], [], []>} : vector<8x8xf32>, vector<8x256xf32>, vector<8x256xf32> -> vector<8x256xf32>
    %48 = arith.addf %43, %47 : vector<8x256xf32>
    %c0_46 = arith.constant 0 : index
    %c0_47 = arith.constant 0 : index
    %49 = vector.load %arg3[%c0_46, %c0_47] : memref<8x1xf32, #tpu.memory_space<vmem>>, vector<8x1xf32>
    %50 = vector.broadcast %49 : vector<8x1xf32> to vector<8x256xf32>
    %51 = arith.addf %48, %50 : vector<8x256xf32>
    %c0_48 = arith.constant 0 : index
    %c0_49 = arith.constant 0 : index
    %c0_50 = arith.constant 0 : index
    %52 = vector.load %arg4[%c0_48, %c0_49, %c0_50] : memref<2x8x256xf32, #tpu.memory_space<vmem>>, vector<1x8x256xf32>
    %53 = vector.shape_cast %52 : vector<1x8x256xf32> to vector<8x256xf32>
    %54 = vector.shape_cast %51 : vector<8x256xf32> to vector<1x8x256xf32>
    tpu.vector_store %arg4[%c0_48, %c0_49, %c0_50], %54 {strides = array<i32>} : memref<2x8x256xf32, #tpu.memory_space<vmem>>, vector<1x8x256xf32>,
    %c1_51 = arith.constant 1 : index
    %c0_52 = arith.constant 0 : index
    %c0_53 = arith.constant 0 : index
    %55 = vector.load %arg1[%c1_51, %c0_52, %c0_53] : memref<2x4x256xf32, #tpu.memory_space<vmem>>, vector<1x4x256xf32>
    %56 = vector.shape_cast %55 : vector<1x4x256xf32> to vector<4x256xf32>
    %c0_54 = arith.constant 0 : index
    %c0_55 = arith.constant 0 : index
    %57 = vector.load %arg5[%c0_54, %c0_55] : memref<8x384xf32, #tpu.memory_space<vmem>>, vector<4x256xf32>
    tpu.vector_store %arg5[%c0_54, %c0_55], %56 {strides = array<i32>} : memref<8x384xf32, #tpu.memory_space<vmem>>, vector<4x256xf32>,
    %c0_56 = arith.constant 0 : index
    %c0_57 = arith.constant 0 : index
    %c0_58 = arith.constant 0 : index
    %58 = vector.load %arg2[%c0_56, %c0_57, %c0_58] : memref<9x8x8xf32, #tpu.memory_space<vmem>>, vector<1x8x8xf32>
    %59 = vector.shape_cast %58 : vector<1x8x8xf32> to vector<8x8xf32>
    %c0_59 = arith.constant 0 : index
    %c0_60 = arith.constant 0 : index
    %60 = vector.load %arg5[%c0_59, %c0_60] : memref<8x384xf32, #tpu.memory_space<vmem>>, vector<8x256xf32>
    %cst_61 = arith.constant dense<0.000000e+00> : vector<8x256xf32>
    %61 = tpu.matmul %59, %60, %cst_61 {dimension_numbers = #tpu.dot_dimension_numbers<[1], [0], [0], [1], [0, 0, 1, 1], [], []>} : vector<8x8xf32>, vector<8x256xf32>, vector<8x256xf32> -> vector<8x256xf32>
    %c1_62 = arith.constant 1 : index
    %c0_63 = arith.constant 0 : index
    %c0_64 = arith.constant 0 : index
    %62 = vector.load %arg2[%c1_62, %c0_63, %c0_64] : memref<9x8x8xf32, #tpu.memory_space<vmem>>, vector<1x8x8xf32>
    %63 = vector.shape_cast %62 : vector<1x8x8xf32> to vector<8x8xf32>
    %c0_65 = arith.constant 0 : index
    %c1_66 = arith.constant 1 : index
    %64 = vector.load %arg5[%c0_65, %c1_66] : memref<8x384xf32, #tpu.memory_space<vmem>>, vector<8x256xf32>
    %cst_67 = arith.constant dense<0.000000e+00> : vector<8x256xf32>
    %65 = tpu.matmul %63, %64, %cst_67 {dimension_numbers = #tpu.dot_dimension_numbers<[1], [0], [0], [1], [0, 0, 1, 1], [], []>} : vector<8x8xf32>, vector<8x256xf32>, vector<8x256xf32> -> vector<8x256xf32>
    %66 = arith.addf %61, %65 : vector<8x256xf32>
    %c2_68 = arith.constant 2 : index
    %c0_69 = arith.constant 0 : index
    %c0_70 = arith.constant 0 : index
    %67 = vector.load %arg2[%c2_68, %c0_69, %c0_70] : memref<9x8x8xf32, #tpu.memory_space<vmem>>, vector<1x8x8xf32>
    %68 = vector.shape_cast %67 : vector<1x8x8xf32> to vector<8x8xf32>
    %c0_71 = arith.constant 0 : index
    %c2_72 = arith.constant 2 : index
    %69 = vector.load %arg5[%c0_71, %c2_72] : memref<8x384xf32, #tpu.memory_space<vmem>>, vector<8x256xf32>
    %cst_73 = arith.constant dense<0.000000e+00> : vector<8x256xf32>
    %70 = tpu.matmul %68, %69, %cst_73 {dimension_numbers = #tpu.dot_dimension_numbers<[1], [0], [0], [1], [0, 0, 1, 1], [], []>} : vector<8x8xf32>, vector<8x256xf32>, vector<8x256xf32> -> vector<8x256xf32>
    %71 = arith.addf %66, %70 : vector<8x256xf32>
    %c3_74 = arith.constant 3 : index
    %c0_75 = arith.constant 0 : index
    %c0_76 = arith.constant 0 : index
    %72 = vector.load %arg2[%c3_74, %c0_75, %c0_76] : memref<9x8x8xf32, #tpu.memory_space<vmem>>, vector<1x8x8xf32>
    %73 = vector.shape_cast %72 : vector<1x8x8xf32> to vector<8x8xf32>
    %c0_77 = arith.constant 0 : index
    %c16_78 = arith.constant 16 : index
    %74 = vector.load %arg5[%c0_77, %c16_78] : memref<8x384xf32, #tpu.memory_space<vmem>>, vector<8x256xf32>
    %cst_79 = arith.constant dense<0.000000e+00> : vector<8x256xf32>
    %75 = tpu.matmul %73, %74, %cst_79 {dimension_numbers = #tpu.dot_dimension_numbers<[1], [0], [0], [1], [0, 0, 1, 1], [], []>} : vector<8x8xf32>, vector<8x256xf32>, vector<8x256xf32> -> vector<8x256xf32>
    %76 = arith.addf %71, %75 : vector<8x256xf32>
    %c4_80 = arith.constant 4 : index
    %c0_81 = arith.constant 0 : index
    %c0_82 = arith.constant 0 : index
    %77 = vector.load %arg2[%c4_80, %c0_81, %c0_82] : memref<9x8x8xf32, #tpu.memory_space<vmem>>, vector<1x8x8xf32>
    %78 = vector.shape_cast %77 : vector<1x8x8xf32> to vector<8x8xf32>
    %c0_83 = arith.constant 0 : index
    %c17_84 = arith.constant 17 : index
    %79 = vector.load %arg5[%c0_83, %c17_84] : memref<8x384xf32, #tpu.memory_space<vmem>>, vector<8x256xf32>
    %cst_85 = arith.constant dense<0.000000e+00> : vector<8x256xf32>
    %80 = tpu.matmul %78, %79, %cst_85 {dimension_numbers = #tpu.dot_dimension_numbers<[1], [0], [0], [1], [0, 0, 1, 1], [], []>} : vector<8x8xf32>, vector<8x256xf32>, vector<8x256xf32> -> vector<8x256xf32>
    %81 = arith.addf %76, %80 : vector<8x256xf32>
    %c5_86 = arith.constant 5 : index
    %c0_87 = arith.constant 0 : index
    %c0_88 = arith.constant 0 : index
    %82 = vector.load %arg2[%c5_86, %c0_87, %c0_88] : memref<9x8x8xf32, #tpu.memory_space<vmem>>, vector<1x8x8xf32>
    %83 = vector.shape_cast %82 : vector<1x8x8xf32> to vector<8x8xf32>
    %c0_89 = arith.constant 0 : index
    %c18_90 = arith.constant 18 : index
    %84 = vector.load %arg5[%c0_89, %c18_90] : memref<8x384xf32, #tpu.memory_space<vmem>>, vector<8x256xf32>
    %cst_91 = arith.constant dense<0.000000e+00> : vector<8x256xf32>
    %85 = tpu.matmul %83, %84, %cst_91 {dimension_numbers = #tpu.dot_dimension_numbers<[1], [0], [0], [1], [0, 0, 1, 1], [], []>} : vector<8x8xf32>, vector<8x256xf32>, vector<8x256xf32> -> vector<8x256xf32>
    %86 = arith.addf %81, %85 : vector<8x256xf32>
    %c6_92 = arith.constant 6 : index
    %c0_93 = arith.constant 0 : index
    %c0_94 = arith.constant 0 : index
    %87 = vector.load %arg2[%c6_92, %c0_93, %c0_94] : memref<9x8x8xf32, #tpu.memory_space<vmem>>, vector<1x8x8xf32>
    %88 = vector.shape_cast %87 : vector<1x8x8xf32> to vector<8x8xf32>
    %c0_95 = arith.constant 0 : index
    %c32_96 = arith.constant 32 : index
    %89 = vector.load %arg5[%c0_95, %c32_96] : memref<8x384xf32, #tpu.memory_space<vmem>>, vector<8x256xf32>
    %cst_97 = arith.constant dense<0.000000e+00> : vector<8x256xf32>
    %90 = tpu.matmul %88, %89, %cst_97 {dimension_numbers = #tpu.dot_dimension_numbers<[1], [0], [0], [1], [0, 0, 1, 1], [], []>} : vector<8x8xf32>, vector<8x256xf32>, vector<8x256xf32> -> vector<8x256xf32>
    %91 = arith.addf %86, %90 : vector<8x256xf32>
    %c7_98 = arith.constant 7 : index
    %c0_99 = arith.constant 0 : index
    %c0_100 = arith.constant 0 : index
    %92 = vector.load %arg2[%c7_98, %c0_99, %c0_100] : memref<9x8x8xf32, #tpu.memory_space<vmem>>, vector<1x8x8xf32>
    %93 = vector.shape_cast %92 : vector<1x8x8xf32> to vector<8x8xf32>
    %c0_101 = arith.constant 0 : index
    %c33_102 = arith.constant 33 : index
    %94 = vector.load %arg5[%c0_101, %c33_102] : memref<8x384xf32, #tpu.memory_space<vmem>>, vector<8x256xf32>
    %cst_103 = arith.constant dense<0.000000e+00> : vector<8x256xf32>
    %95 = tpu.matmul %93, %94, %cst_103 {dimension_numbers = #tpu.dot_dimension_numbers<[1], [0], [0], [1], [0, 0, 1, 1], [], []>} : vector<8x8xf32>, vector<8x256xf32>, vector<8x256xf32> -> vector<8x256xf32>
    %96 = arith.addf %91, %95 : vector<8x256xf32>
    %c8_104 = arith.constant 8 : index
    %c0_105 = arith.constant 0 : index
    %c0_106 = arith.constant 0 : index
    %97 = vector.load %arg2[%c8_104, %c0_105, %c0_106] : memref<9x8x8xf32, #tpu.memory_space<vmem>>, vector<1x8x8xf32>
    %98 = vector.shape_cast %97 : vector<1x8x8xf32> to vector<8x8xf32>
    %c0_107 = arith.constant 0 : index
    %c34_108 = arith.constant 34 : index
    %99 = vector.load %arg5[%c0_107, %c34_108] : memref<8x384xf32, #tpu.memory_space<vmem>>, vector<8x256xf32>
    %cst_109 = arith.constant dense<0.000000e+00> : vector<8x256xf32>
    %100 = tpu.matmul %98, %99, %cst_109 {dimension_numbers = #tpu.dot_dimension_numbers<[1], [0], [0], [1], [0, 0, 1, 1], [], []>} : vector<8x8xf32>, vector<8x256xf32>, vector<8x256xf32> -> vector<8x256xf32>
    %101 = arith.addf %96, %100 : vector<8x256xf32>
    %c0_110 = arith.constant 0 : index
    %c0_111 = arith.constant 0 : index
    %102 = vector.load %arg3[%c0_110, %c0_111] : memref<8x1xf32, #tpu.memory_space<vmem>>, vector<8x1xf32>
    %103 = vector.broadcast %102 : vector<8x1xf32> to vector<8x256xf32>
    %104 = arith.addf %101, %103 : vector<8x256xf32>
    %c1_112 = arith.constant 1 : index
    %c0_113 = arith.constant 0 : index
    %c0_114 = arith.constant 0 : index
    %105 = vector.load %arg4[%c1_112, %c0_113, %c0_114] : memref<2x8x256xf32, #tpu.memory_space<vmem>>, vector<1x8x256xf32>
    %106 = vector.shape_cast %105 : vector<1x8x256xf32> to vector<8x256xf32>
    %107 = vector.shape_cast %104 : vector<8x256xf32> to vector<1x8x256xf32>
    tpu.vector_store %arg4[%c1_112, %c0_113, %c0_114], %107 {strides = array<i32>} : memref<2x8x256xf32, #tpu.memory_space<vmem>>, vector<1x8x256xf32>,
    return
  }
  func.func @transform_0(%arg0: i32) -> (i32, i32, i32) {
    %c0_i32 = arith.constant 0 : i32
    %c0_i32_0 = arith.constant 0 : i32
    %c0_i32_1 = arith.constant 0 : i32
    return %arg0, %c0_i32, %c0_i32_0 : i32, i32, i32
  }
  func.func @transform_1(%arg0: i32) -> (i32, i32, i32) {
    %c0_i32 = arith.constant 0 : i32
    %c0_i32_0 = arith.constant 0 : i32
    %c0_i32_1 = arith.constant 0 : i32
    %c0_i32_2 = arith.constant 0 : i32
    return %c0_i32, %c0_i32_0, %c0_i32_1 : i32, i32, i32
  }
  func.func @transform_2(%arg0: i32) -> (i32, i32) {
    %c0_i32 = arith.constant 0 : i32
    %c0_i32_0 = arith.constant 0 : i32
    %c0_i32_1 = arith.constant 0 : i32
    return %c0_i32, %c0_i32_0 : i32, i32
  }
  func.func @transform_3(%arg0: i32) -> (i32, i32, i32) {
    %c0_i32 = arith.constant 0 : i32
    %c0_i32_0 = arith.constant 0 : i32
    %c0_i32_1 = arith.constant 0 : i32
    return %arg0, %c0_i32, %c0_i32_0 : i32, i32, i32
  }
}

</mosaic_0001>

<llo_original>
// kernel: rand_concat_conv2d.1
$region0: #{rand_concat_conv2d.1}
  #allocation0 [shape = 'u32[]', space=smem, size = 0x4, offset = 0x4, fixed_abs, tag = 'smem constant byte address 0x4 - core index']
  #allocation1 [shape = 'u32[144,128]{1,0:T(1,128)}', space=vmem, size = 0x12000, scoped, tag = 'internal scratch']
  #allocation2 [shape = 'f32[8,384]{1,0:T(8,128)}', space=vmem, size = 0x3000, scoped, tag = 'scratch operand']
  %s0 = inlined_call_operand.vmem [shape: f32[2,4,256], index: 0, kind: input, shape index: {}]
  %s1 = inlined_call_operand.vmem [shape: f32[9,8,8], index: 1, kind: input, shape index: {}]
  %s2 = inlined_call_operand.vmem [shape: f32[8,1], index: 2, kind: input, shape index: {}]
  %s3 = inlined_call_operand.vmem [shape: f32[2,8,256], index: 3, kind: output, shape index: {}]
  %s4 = sld [smem:[#allocation0]]
  $region22: #{rand_concat_conv2d.1} parent=0
    _
  %s6 = ssub.s32 1, %s4
  %s7 = scalar_select 0, %s6, %s4
  // Predicated region
  $region2: #{rand_concat_conv2d.1} parent=0 // pred_check
    _
  $region3: #{rand_concat_conv2d.1} parent=0 // pred_check_branch
    %9 = sbr.rel (0) target = $region5
  $region4: #{rand_concat_conv2d.1} parent=0 // pred_region
    _
  $region5: #{rand_concat_conv2d.1} parent=0 // pred_fallthru
    _
  // Predicated region
  $region6: #{rand_concat_conv2d.1} parent=0 // pred_check
    _
  $region7: #{rand_concat_conv2d.1} parent=0 // pred_check_branch
    %11 = sbr.rel (0) target = $region9
  $region8: #{rand_concat_conv2d.1} parent=0 // pred_region
    _
  $region9: #{rand_concat_conv2d.1} parent=0 // pred_fallthru
    _
  // Predicated region
  $region10: #{rand_concat_conv2d.1} parent=0 // pred_check
    _
  $region11: #{rand_concat_conv2d.1} parent=0 // pred_check_branch
    %13 = sbr.rel (0) target = $region13
  $region12: #{rand_concat_conv2d.1} parent=0 // pred_region
    _
  $region13: #{rand_concat_conv2d.1} parent=0 // pred_fallthru
    _
  %14 = vst [vmem:[#allocation2] sm:$0xff] 0.0
  %15 = vst [vmem:[#allocation2 + $0x8] sm:$0xff] 0.0
  %16 = vst [vmem:[#allocation2 + $0x10] sm:$0xff] 0.0
  %v17 = vld [vmem:[%s0] sm:$0xff]
  %v19 = vcombine.high %v17, %v17
  %21 = vst [vmem:[#allocation2] sm:$0xf] %v17
  %22 = vst [vmem:[#allocation2 + $0x8] sm:$0xf] %v19
  %v23 = vld [vmem:[%s1] sm:$0xff]
  %v24 = vld [vmem:[#allocation2] sm:$0xff]
  %v25 = vld [vmem:[#allocation2 + $0x8] sm:$0xff]
  %s26 = scalar_lea.vmem %s1, 8
  %v27 = vld [vmem:[%s26] sm:$0xff]
  %v28 = vld [vmem:[#allocation2] sm:$0xff]
  %v29 = vld [vmem:[#allocation2 + $0x8] sm:$0xff]
  %v30 = vld [vmem:[#allocation2 + $0x10] sm:$0xff]
  %34 = vrot.lane.b32.xlu0 %v28, 127
  %v35 = vpop.permute.xlu0 %34
  %36 = vrot.lane.b32.xlu0 %v29, 127
  %v37 = vpop.permute.xlu0 %36
  %38 = vrot.lane.b32.xlu0 %v30, 127
  %v39 = vpop.permute.xlu0 %38
  %vm40 = vcmask 1039360
  %v41 = vsel %vm40, %v35, %v37
  %v42 = vsel %vm40, %v37, %v39
  %vm45 = vcmask 64512
  %v47 = vsel %vm45, %v27, 0
  %49 = vmatprep.subr.mxu0 0.0
  %50 = vmatpush1.msra.mxu0 0.0
  %51 = vmatprep.subr.mxu0 0.0
  %52 = vmatpush1.msra.mxu0 0.0
  %53 = vmatprep.subr.mxu0 0.0
  %54 = vmatpush1.msra.mxu0 0.0
  %55 = vmatprep.subr.mxu0 0.0
  %56 = vmatpush1.msra.mxu0 0.0
  %57 = vmatprep.subr.mxu0 0.0
  %58 = vmatpush1.msra.mxu0 0.0
  %59 = vmatprep.subr.mxu0 0.0
  %60 = vmatpush1.msra.mxu0 0.0
  %61 = vmatprep.subr.mxu0 0.0
  %62 = vmatpush1.msra.mxu0 0.0
  %63 = vmatprep.subr.mxu0 0.0
  %64 = vmatpush1.msra.mxu0 0.0
  %65 = vmatprep.subr.mxu0 0.0
  %66 = vmatpush1.msra.mxu0 0.0
  %67 = vmatprep.subr.mxu0 0.0
  %68 = vmatpush1.msra.mxu0 0.0
  %69 = vmatprep.subr.mxu0 0.0
  %70 = vmatpush1.msra.mxu0 0.0
  %71 = vmatprep.subr.mxu0 0.0
  %72 = vmatpush1.msra.mxu0 0.0
  %73 = vmatprep.subr.mxu0 0.0
  %74 = vmatpush1.msra.mxu0 0.0
  %75 = vmatprep.subr.mxu0 0.0
  %76 = vmatpush1.msra.mxu0 0.0
  %77 = vmatprep.subr.mxu0 0.0
  %78 = vmatpush1.msra.mxu0 0.0
  %79 = vmatprep.subr.mxu0 %v42
  %80 = vmatpush1.msra.mxu0 %v41
  %81 = vmatprep.subr.mxu0 0.0
  %82 = vmatpush2.msra.mxu0 0.0
  %83 = vmatprep.subr.mxu0 0.0
  %84 = vmatpush2.msra.mxu0 0.0
  %85 = vmatprep.subr.mxu0 0.0
  %86 = vmatpush2.msra.mxu0 0.0
  %87 = vmatprep.subr.mxu0 0.0
  %88 = vmatpush2.msra.mxu0 0.0
  %89 = vmatprep.subr.mxu0 0.0
  %90 = vmatpush2.msra.mxu0 0.0
  %91 = vmatprep.subr.mxu0 0.0
  %92 = vmatpush2.msra.mxu0 0.0
  %93 = vmatprep.subr.mxu0 0.0
  %94 = vmatpush2.msra.mxu0 0.0
  %95 = vmatprep.subr.mxu0 0.0
  %96 = vmatpush2.msra.mxu0 0.0
  %97 = vmatprep.subr.mxu0 0.0
  %98 = vmatpush2.msra.mxu0 0.0
  %99 = vmatprep.subr.mxu0 0.0
  %100 = vmatpush2.msra.mxu0 0.0
  %101 = vmatprep.subr.mxu0 0.0
  %102 = vmatpush2.msra.mxu0 0.0
  %103 = vmatprep.subr.mxu0 0.0
  %104 = vmatpush2.msra.mxu0 0.0
  %105 = vmatprep.subr.mxu0 0.0
  %106 = vmatpush2.msra.mxu0 0.0
  %107 = vmatprep.subr.mxu0 0.0
  %108 = vmatpush2.msra.mxu0 0.0
  %109 = vmatprep.subr.mxu0 0.0
  %110 = vmatpush2.msra.mxu0 0.0
  %111 = vmatprep.subr.mxu0 0.0
  %112 = vmatpush2.msra.mxu0 0.0
  %113 = vmatprep.mubr.f32.mxu0 0.0
  %114 = vmatmul.mubr.f32.gmra.mxu0 %v47
  %v115 = vpop.f32.mrf.mxu0
  %v116 = vadd.f32 0.0, %v115
  %v117 = vpop.f32.mrf.mxu0
  %v118 = vadd.f32 0.0, %v117
  %119 = vdwg.mxu0
  %v121 = vsel %vm45, %v23, 0
  %123 = vmatprep.subr.mxu0 0.0
  %124 = vmatpush1.msra.mxu0 0.0
  %125 = vmatprep.subr.mxu0 0.0
  %126 = vmatpush1.msra.mxu0 0.0
  %127 = vmatprep.subr.mxu0 0.0
  %128 = vmatpush1.msra.mxu0 0.0
  %129 = vmatprep.subr.mxu0 0.0
  %130 = vmatpush1.msra.mxu0 0.0
  %131 = vmatprep.subr.mxu0 0.0
  %132 = vmatpush1.msra.mxu0 0.0
  %133 = vmatprep.subr.mxu0 0.0
  %134 = vmatpush1.msra.mxu0 0.0
  %135 = vmatprep.subr.mxu0 0.0
  %136 = vmatpush1.msra.mxu0 0.0
  %137 = vmatprep.subr.mxu0 0.0
  %138 = vmatpush1.msra.mxu0 0.0
  %139 = vmatprep.subr.mxu0 0.0
  %140 = vmatpush1.msra.mxu0 0.0
  %141 = vmatprep.subr.mxu0 0.0
  %142 = vmatpush1.msra.mxu0 0.0
  %143 = vmatprep.subr.mxu0 0.0
  %144 = vmatpush1.msra.mxu0 0.0
  %145 = vmatprep.subr.mxu0 0.0
  %146 = vmatpush1.msra.mxu0 0.0
  %147 = vmatprep.subr.mxu0 0.0
  %148 = vmatpush1.msra.mxu0 0.0
  %149 = vmatprep.subr.mxu0 0.0
  %150 = vmatpush1.msra.mxu0 0.0
  %151 = vmatprep.subr.mxu0 0.0
  %152 = vmatpush1.msra.mxu0 0.0
  %153 = vmatprep.subr.mxu0 %v25
  %154 = vmatpush1.msra.mxu0 %v24
  %155 = vmatprep.subr.mxu0 0.0
  %156 = vmatpush2.msra.mxu0 0.0
  %157 = vmatprep.subr.mxu0 0.0
  %158 = vmatpush2.msra.mxu0 0.0
  %159 = vmatprep.subr.mxu0 0.0
  %160 = vmatpush2.msra.mxu0 0.0
  %161 = vmatprep.subr.mxu0 0.0
  %162 = vmatpush2.msra.mxu0 0.0
  %163 = vmatprep.subr.mxu0 0.0
  %164 = vmatpush2.msra.mxu0 0.0
  %165 = vmatprep.subr.mxu0 0.0
  %166 = vmatpush2.msra.mxu0 0.0
  %167 = vmatprep.subr.mxu0 0.0
  %168 = vmatpush2.msra.mxu0 0.0
  %169 = vmatprep.subr.mxu0 0.0
  %170 = vmatpush2.msra.mxu0 0.0
  %171 = vmatprep.subr.mxu0 0.0
  %172 = vmatpush2.msra.mxu0 0.0
  %173 = vmatprep.subr.mxu0 0.0
  %174 = vmatpush2.msra.mxu0 0.0
  %175 = vmatprep.subr.mxu0 0.0
  %176 = vmatpush2.msra.mxu0 0.0
  %177 = vmatprep.subr.mxu0 0.0
  %178 = vmatpush2.msra.mxu0 0.0
  %179 = vmatprep.subr.mxu0 0.0
  %180 = vmatpush2.msra.mxu0 0.0
  %181 = vmatprep.subr.mxu0 0.0
  %182 = vmatpush2.msra.mxu0 0.0
  %183 = vmatprep.subr.mxu0 0.0
  %184 = vmatpush2.msra.mxu0 0.0
  %185 = vmatprep.subr.mxu0 0.0
  %186 = vmatpush2.msra.mxu0 0.0
  %187 = vmatprep.mubr.f32.mxu0 0.0
  %188 = vmatmul.mubr.f32.gmra.mxu0 %v121
  %v189 = vpop.f32.mrf.mxu0
  %v190 = vadd.f32 %v116, %v189
  %v191 = vpop.f32.mrf.mxu0
  %v192 = vadd.f32 %v118, %v191
  %193 = vdwg.mxu0
  %s194 = scalar_lea.vmem %s1, 16
  %v195 = vld [vmem:[%s194] sm:$0xff]
  %196 = vrot.lane.b32.xlu0 %v28, 126
  %v197 = vpop.permute.xlu0 %196
  %198 = vrot.lane.b32.xlu0 %v29, 126
  %v199 = vpop.permute.xlu0 %198
  %200 = vrot.lane.b32.xlu0 %v30, 126
  %v201 = vpop.permute.xlu0 %200
  %vm202 = vcmask 1031168
  %v203 = vsel %vm202, %v197, %v199
  %v204 = vsel %vm202, %v199, %v201
  %v208 = vsel %vm45, %v195, 0
  %210 = vmatprep.subr.mxu0 0.0
  %211 = vmatpush1.msra.mxu0 0.0
  %212 = vmatprep.subr.mxu0 0.0
  %213 = vmatpush1.msra.mxu0 0.0
  %214 = vmatprep.subr.mxu0 0.0
  %215 = vmatpush1.msra.mxu0 0.0
  %216 = vmatprep.subr.mxu0 0.0
  %217 = vmatpush1.msra.mxu0 0.0
  %218 = vmatprep.subr.mxu0 0.0
  %219 = vmatpush1.msra.mxu0 0.0
  %220 = vmatprep.subr.mxu0 0.0
  %221 = vmatpush1.msra.mxu0 0.0
  %222 = vmatprep.subr.mxu0 0.0
  %223 = vmatpush1.msra.mxu0 0.0
  %224 = vmatprep.subr.mxu0 0.0
  %225 = vmatpush1.msra.mxu0 0.0
  %226 = vmatprep.subr.mxu0 0.0
  %227 = vmatpush1.msra.mxu0 0.0
  %228 = vmatprep.subr.mxu0 0.0
  %229 = vmatpush1.msra.mxu0 0.0
  %230 = vmatprep.subr.mxu0 0.0
  %231 = vmatpush1.msra.mxu0 0.0
  %232 = vmatprep.subr.mxu0 0.0
  %233 = vmatpush1.msra.mxu0 0.0
  %234 = vmatprep.subr.mxu0 0.0
  %235 = vmatpush1.msra.mxu0 0.0
  %236 = vmatprep.subr.mxu0 0.0
  %237 = vmatpush1.msra.mxu0 0.0
  %238 = vmatprep.subr.mxu0 0.0
  %239 = vmatpush1.msra.mxu0 0.0
  %240 = vmatprep.subr.mxu0 %v204
  %241 = vmatpush1.msra.mxu0 %v203
  %242 = vmatprep.subr.mxu0 0.0
  %243 = vmatpush2.msra.mxu0 0.0
  %244 = vmatprep.subr.mxu0 0.0
  %245 = vmatpush2.msra.mxu0 0.0
  %246 = vmatprep.subr.mxu0 0.0
  %247 = vmatpush2.msra.mxu0 0.0
  %248 = vmatprep.subr.mxu0 0.0
  %249 = vmatpush2.msra.mxu0 0.0
  %250 = vmatprep.subr.mxu0 0.0
  %251 = vmatpush2.msra.mxu0 0.0
  %252 = vmatprep.subr.mxu0 0.0
  %253 = vmatpush2.msra.mxu0 0.0
  %254 = vmatprep.subr.mxu0 0.0
  %255 = vmatpush2.msra.mxu0 0.0
  %256 = vmatprep.subr.mxu0 0.0
  %257 = vmatpush2.msra.mxu0 0.0
  %258 = vmatprep.subr.mxu0 0.0
  %259 = vmatpush2.msra.mxu0 0.0
  %260 = vmatprep.subr.mxu0 0.0
  %261 = vmatpush2.msra.mxu0 0.0
  %262 = vmatprep.subr.mxu0 0.0
  %263 = vmatpush2.msra.mxu0 0.0
  %264 = vmatprep.subr.mxu0 0.0
  %265 = vmatpush2.msra.mxu0 0.0
  %266 = vmatprep.subr.mxu0 0.0
  %267 = vmatpush2.msra.mxu0 0.0
  %268 = vmatprep.subr.mxu0 0.0
  %269 = vmatpush2.msra.mxu0 0.0
  %270 = vmatprep.subr.mxu0 0.0
  %271 = vmatpush2.msra.mxu0 0.0
  %272 = vmatprep.subr.mxu0 0.0
  %273 = vmatpush2.msra.mxu0 0.0
  %274 = vmatprep.mubr.f32.mxu0 0.0
  %275 = vmatmul.mubr.f32.gmra.mxu0 %v208
  %v276 = vpop.f32.mrf.mxu0
  %v277 = vadd.f32 0.0, %v276
  %v278 = vpop.f32.mrf.mxu0
  %v279 = vadd.f32 0.0, %v278
  %280 = vdwg.mxu0
  %v281 = vadd.f32 %v190, %v277
  %v282 = vadd.f32 %v192, %v279
  %s283 = scalar_lea.vmem %s1, 24
  %v284 = vld [vmem:[%s283] sm:$0xff]
  %285 = vrot.lane.b32.xlu0 %v28, 112
  %v286 = vpop.permute.xlu0 %285
  %287 = vrot.lane.b32.xlu0 %v29, 112
  %v288 = vpop.permute.xlu0 %287
  %289 = vrot.lane.b32.xlu0 %v30, 112
  %v290 = vpop.permute.xlu0 %289
  %vm291 = vcmask 916480
  %v292 = vsel %vm291, %v286, %v288
  %v293 = vsel %vm291, %v288, %v290
  %v297 = vsel %vm45, %v284, 0
  %299 = vmatprep.subr.mxu0 0.0
  %300 = vmatpush1.msra.mxu0 0.0
  %301 = vmatprep.subr.mxu0 0.0
  %302 = vmatpush1.msra.mxu0 0.0
  %303 = vmatprep.subr.mxu0 0.0
  %304 = vmatpush1.msra.mxu0 0.0
  %305 = vmatprep.subr.mxu0 0.0
  %306 = vmatpush1.msra.mxu0 0.0
  %307 = vmatprep.subr.mxu0 0.0
  %308 = vmatpush1.msra.mxu0 0.0
  %309 = vmatprep.subr.mxu0 0.0
  %310 = vmatpush1.msra.mxu0 0.0
  %311 = vmatprep.subr.mxu0 0.0
  %312 = vmatpush1.msra.mxu0 0.0
  %313 = vmatprep.subr.mxu0 0.0
  %314 = vmatpush1.msra.mxu0 0.0
  %315 = vmatprep.subr.mxu0 0.0
  %316 = vmatpush1.msra.mxu0 0.0
  %317 = vmatprep.subr.mxu0 0.0
  %318 = vmatpush1.msra.mxu0 0.0
  %319 = vmatprep.subr.mxu0 0.0
  %320 = vmatpush1.msra.mxu0 0.0
  %321 = vmatprep.subr.mxu0 0.0
  %322 = vmatpush1.msra.mxu0 0.0
  %323 = vmatprep.subr.mxu0 0.0
  %324 = vmatpush1.msra.mxu0 0.0
  %325 = vmatprep.subr.mxu0 0.0
  %326 = vmatpush1.msra.mxu0 0.0
  %327 = vmatprep.subr.mxu0 0.0
  %328 = vmatpush1.msra.mxu0 0.0
  %329 = vmatprep.subr.mxu0 %v293
  %330 = vmatpush1.msra.mxu0 %v292
  %331 = vmatprep.subr.mxu0 0.0
  %332 = vmatpush2.msra.mxu0 0.0
  %333 = vmatprep.subr.mxu0 0.0
  %334 = vmatpush2.msra.mxu0 0.0
  %335 = vmatprep.subr.mxu0 0.0
  %336 = vmatpush2.msra.mxu0 0.0
  %337 = vmatprep.subr.mxu0 0.0
  %338 = vmatpush2.msra.mxu0 0.0
  %339 = vmatprep.subr.mxu0 0.0
  %340 = vmatpush2.msra.mxu0 0.0
  %341 = vmatprep.subr.mxu0 0.0
  %342 = vmatpush2.msra.mxu0 0.0
  %343 = vmatprep.subr.mxu0 0.0
  %344 = vmatpush2.msra.mxu0 0.0
  %345 = vmatprep.subr.mxu0 0.0
  %346 = vmatpush2.msra.mxu0 0.0
  %347 = vmatprep.subr.mxu0 0.0
  %348 = vmatpush2.msra.mxu0 0.0
  %349 = vmatprep.subr.mxu0 0.0
  %350 = vmatpush2.msra.mxu0 0.0
  %351 = vmatprep.subr.mxu0 0.0
  %352 = vmatpush2.msra.mxu0 0.0
  %353 = vmatprep.subr.mxu0 0.0
  %354 = vmatpush2.msra.mxu0 0.0
  %355 = vmatprep.subr.mxu0 0.0
  %356 = vmatpush2.msra.mxu0 0.0
  %357 = vmatprep.subr.mxu0 0.0
  %358 = vmatpush2.msra.mxu0 0.0
  %359 = vmatprep.subr.mxu0 0.0
  %360 = vmatpush2.msra.mxu0 0.0
  %361 = vmatprep.subr.mxu0 0.0
  %362 = vmatpush2.msra.mxu0 0.0
  %363 = vmatprep.mubr.f32.mxu0 0.0
  %364 = vmatmul.mubr.f32.gmra.mxu0 %v297
  %v365 = vpop.f32.mrf.mxu0
  %v366 = vadd.f32 0.0, %v365
  %v367 = vpop.f32.mrf.mxu0
  %v368 = vadd.f32 0.0, %v367
  %369 = vdwg.mxu0
  %v370 = vadd.f32 %v281, %v366
  %v371 = vadd.f32 %v282, %v368
  %s372 = scalar_lea.vmem %s1, 32
  %v373 = vld [vmem:[%s372] sm:$0xff]
  %374 = vrot.lane.b32.xlu0 %v28, 111
  %v375 = vpop.permute.xlu0 %374
  %376 = vrot.lane.b32.xlu0 %v29, 111
  %v377 = vpop.permute.xlu0 %376
  %378 = vrot.lane.b32.xlu0 %v30, 111
  %v379 = vpop.permute.xlu0 %378
  %vm380 = vcmask 908288
  %v381 = vsel %vm380, %v375, %v377
  %v382 = vsel %vm380, %v377, %v379
  %v386 = vsel %vm45, %v373, 0
  %388 = vmatprep.subr.mxu0 0.0
  %389 = vmatpush1.msra.mxu0 0.0
  %390 = vmatprep.subr.mxu0 0.0
  %391 = vmatpush1.msra.mxu0 0.0
  %392 = vmatprep.subr.mxu0 0.0
  %393 = vmatpush1.msra.mxu0 0.0
  %394 = vmatprep.subr.mxu0 0.0
  %395 = vmatpush1.msra.mxu0 0.0
  %396 = vmatprep.subr.mxu0 0.0
  %397 = vmatpush1.msra.mxu0 0.0
  %398 = vmatprep.subr.mxu0 0.0
  %399 = vmatpush1.msra.mxu0 0.0
  %400 = vmatprep.subr.mxu0 0.0
  %401 = vmatpush1.msra.mxu0 0.0
  %402 = vmatprep.subr.mxu0 0.0
  %403 = vmatpush1.msra.mxu0 0.0
  %404 = vmatprep.subr.mxu0 0.0
  %405 = vmatpush1.msra.mxu0 0.0
  %406 = vmatprep.subr.mxu0 0.0
  %407 = vmatpush1.msra.mxu0 0.0
  %408 = vmatprep.subr.mxu0 0.0
  %409 = vmatpush1.msra.mxu0 0.0
  %410 = vmatprep.subr.mxu0 0.0
  %411 = vmatpush1.msra.mxu0 0.0
  %412 = vmatprep.subr.mxu0 0.0
  %413 = vmatpush1.msra.mxu0 0.0
  %414 = vmatprep.subr.mxu0 0.0
  %415 = vmatpush1.msra.mxu0 0.0
  %416 = vmatprep.subr.mxu0 0.0
  %417 = vmatpush1.msra.mxu0 0.0
  %418 = vmatprep.subr.mxu0 %v382
  %419 = vmatpush1.msra.mxu0 %v381
  %420 = vmatprep.subr.mxu0 0.0
  %421 = vmatpush2.msra.mxu0 0.0
  %422 = vmatprep.subr.mxu0 0.0
  %423 = vmatpush2.msra.mxu0 0.0
  %424 = vmatprep.subr.mxu0 0.0
  %425 = vmatpush2.msra.mxu0 0.0
  %426 = vmatprep.subr.mxu0 0.0
  %427 = vmatpush2.msra.mxu0 0.0
  %428 = vmatprep.subr.mxu0 0.0
  %429 = vmatpush2.msra.mxu0 0.0
  %430 = vmatprep.subr.mxu0 0.0
  %431 = vmatpush2.msra.mxu0 0.0
  %432 = vmatprep.subr.mxu0 0.0
  %433 = vmatpush2.msra.mxu0 0.0
  %434 = vmatprep.subr.mxu0 0.0
  %435 = vmatpush2.msra.mxu0 0.0
  %436 = vmatprep.subr.mxu0 0.0
  %437 = vmatpush2.msra.mxu0 0.0
  %438 = vmatprep.subr.mxu0 0.0
  %439 = vmatpush2.msra.mxu0 0.0
  %440 = vmatprep.subr.mxu0 0.0
  %441 = vmatpush2.msra.mxu0 0.0
  %442 = vmatprep.subr.mxu0 0.0
  %443 = vmatpush2.msra.mxu0 0.0
  %444 = vmatprep.subr.mxu0 0.0
  %445 = vmatpush2.msra.mxu0 0.0
  %446 = vmatprep.subr.mxu0 0.0
  %447 = vmatpush2.msra.mxu0 0.0
  %448 = vmatprep.subr.mxu0 0.0
  %449 = vmatpush2.msra.mxu0 0.0
  %450 = vmatprep.subr.mxu0 0.0
  %451 = vmatpush2.msra.mxu0 0.0
  %452 = vmatprep.mubr.f32.mxu0 0.0
  %453 = vmatmul.mubr.f32.gmra.mxu0 %v386
  %v454 = vpop.f32.mrf.mxu0
  %v455 = vadd.f32 0.0, %v454
  %v456 = vpop.f32.mrf.mxu0
  %v457 = vadd.f32 0.0, %v456
  %458 = vdwg.mxu0
  %v459 = vadd.f32 %v370, %v455
  %v460 = vadd.f32 %v371, %v457
  %s461 = scalar_lea.vmem %s1, 40
  %v462 = vld [vmem:[%s461] sm:$0xff]
  %463 = vrot.lane.b32.xlu0 %v28, 110
  %v464 = vpop.permute.xlu0 %463
  %465 = vrot.lane.b32.xlu0 %v29, 110
  %v466 = vpop.permute.xlu0 %465
  %467 = vrot.lane.b32.xlu0 %v30, 110
  %v468 = vpop.permute.xlu0 %467
  %vm469 = vcmask 900096
  %v470 = vsel %vm469, %v464, %v466
  %v471 = vsel %vm469, %v466, %v468
  %v475 = vsel %vm45, %v462, 0
  %477 = vmatprep.subr.mxu0 0.0
  %478 = vmatpush1.msra.mxu0 0.0
  %479 = vmatprep.subr.mxu0 0.0
  %480 = vmatpush1.msra.mxu0 0.0
  %481 = vmatprep.subr.mxu0 0.0
  %482 = vmatpush1.msra.mxu0 0.0
  %483 = vmatprep.subr.mxu0 0.0
  %484 = vmatpush1.msra.mxu0 0.0
  %485 = vmatprep.subr.mxu0 0.0
  %486 = vmatpush1.msra.mxu0 0.0
  %487 = vmatprep.subr.mxu0 0.0
  %488 = vmatpush1.msra.mxu0 0.0
  %489 = vmatprep.subr.mxu0 0.0
  %490 = vmatpush1.msra.mxu0 0.0
  %491 = vmatprep.subr.mxu0 0.0
  %492 = vmatpush1.msra.mxu0 0.0
  %493 = vmatprep.subr.mxu0 0.0
  %494 = vmatpush1.msra.mxu0 0.0
  %495 = vmatprep.subr.mxu0 0.0
  %496 = vmatpush1.msra.mxu0 0.0
  %497 = vmatprep.subr.mxu0 0.0
  %498 = vmatpush1.msra.mxu0 0.0
  %499 = vmatprep.subr.mxu0 0.0
  %500 = vmatpush1.msra.mxu0 0.0
  %501 = vmatprep.subr.mxu0 0.0
  %502 = vmatpush1.msra.mxu0 0.0
  %503 = vmatprep.subr.mxu0 0.0
  %504 = vmatpush1.msra.mxu0 0.0
  %505 = vmatprep.subr.mxu0 0.0
  %506 = vmatpush1.msra.mxu0 0.0
  %507 = vmatprep.subr.mxu0 %v471
  %508 = vmatpush1.msra.mxu0 %v470
  %509 = vmatprep.subr.mxu0 0.0
  %510 = vmatpush2.msra.mxu0 0.0
  %511 = vmatprep.subr.mxu0 0.0
  %512 = vmatpush2.msra.mxu0 0.0
  %513 = vmatprep.subr.mxu0 0.0
  %514 = vmatpush2.msra.mxu0 0.0
  %515 = vmatprep.subr.mxu0 0.0
  %516 = vmatpush2.msra.mxu0 0.0
  %517 = vmatprep.subr.mxu0 0.0
  %518 = vmatpush2.msra.mxu0 0.0
  %519 = vmatprep.subr.mxu0 0.0
  %520 = vmatpush2.msra.mxu0 0.0
  %521 = vmatprep.subr.mxu0 0.0
  %522 = vmatpush2.msra.mxu0 0.0
  %523 = vmatprep.subr.mxu0 0.0
  %524 = vmatpush2.msra.mxu0 0.0
  %525 = vmatprep.subr.mxu0 0.0
  %526 = vmatpush2.msra.mxu0 0.0
  %527 = vmatprep.subr.mxu0 0.0
  %528 = vmatpush2.msra.mxu0 0.0
  %529 = vmatprep.subr.mxu0 0.0
  %530 = vmatpush2.msra.mxu0 0.0
  %531 = vmatprep.subr.mxu0 0.0
  %532 = vmatpush2.msra.mxu0 0.0
  %533 = vmatprep.subr.mxu0 0.0
  %534 = vmatpush2.msra.mxu0 0.0
  %535 = vmatprep.subr.mxu0 0.0
  %536 = vmatpush2.msra.mxu0 0.0
  %537 = vmatprep.subr.mxu0 0.0
  %538 = vmatpush2.msra.mxu0 0.0
  %539 = vmatprep.subr.mxu0 0.0
  %540 = vmatpush2.msra.mxu0 0.0
  %541 = vmatprep.mubr.f32.mxu0 0.0
  %542 = vmatmul.mubr.f32.gmra.mxu0 %v475
  %v543 = vpop.f32.mrf.mxu0
  %v544 = vadd.f32 0.0, %v543
  %v545 = vpop.f32.mrf.mxu0
  %v546 = vadd.f32 0.0, %v545
  %547 = vdwg.mxu0
  %v548 = vadd.f32 %v459, %v544
  %v549 = vadd.f32 %v460, %v546
  %s550 = scalar_lea.vmem %s1, 48
  %v551 = vld [vmem:[%s550] sm:$0xff]
  %552 = vrot.lane.b32.xlu0 %v28, 96
  %v553 = vpop.permute.xlu0 %552
  %554 = vrot.lane.b32.xlu0 %v29, 96
  %v555 = vpop.permute.xlu0 %554
  %556 = vrot.lane.b32.xlu0 %v30, 96
  %v557 = vpop.permute.xlu0 %556
  %vm558 = vcmask 785408
  %v559 = vsel %vm558, %v553, %v555
  %v560 = vsel %vm558, %v555, %v557
  %v564 = vsel %vm45, %v551, 0
  %566 = vmatprep.subr.mxu0 0.0
  %567 = vmatpush1.msra.mxu0 0.0
  %568 = vmatprep.subr.mxu0 0.0
  %569 = vmatpush1.msra.mxu0 0.0
  %570 = vmatprep.subr.mxu0 0.0
  %571 = vmatpush1.msra.mxu0 0.0
  %572 = vmatprep.subr.mxu0 0.0
  %573 = vmatpush1.msra.mxu0 0.0
  %574 = vmatprep.subr.mxu0 0.0
  %575 = vmatpush1.msra.mxu0 0.0
  %576 = vmatprep.subr.mxu0 0.0
  %577 = vmatpush1.msra.mxu0 0.0
  %578 = vmatprep.subr.mxu0 0.0
  %579 = vmatpush1.msra.mxu0 0.0
  %580 = vmatprep.subr.mxu0 0.0
  %581 = vmatpush1.msra.mxu0 0.0
  %582 = vmatprep.subr.mxu0 0.0
  %583 = vmatpush1.msra.mxu0 0.0
  %584 = vmatprep.subr.mxu0 0.0
  %585 = vmatpush1.msra.mxu0 0.0
  %586 = vmatprep.subr.mxu0 0.0
  %587 = vmatpush1.msra.mxu0 0.0
  %588 = vmatprep.subr.mxu0 0.0
  %589 = vmatpush1.msra.mxu0 0.0
  %590 = vmatprep.subr.mxu0 0.0
  %591 = vmatpush1.msra.mxu0 0.0
  %592 = vmatprep.subr.mxu0 0.0
  %593 = vmatpush1.msra.mxu0 0.0
  %594 = vmatprep.subr.mxu0 0.0
  %595 = vmatpush1.msra.mxu0 0.0
  %596 = vmatprep.subr.mxu0 %v560
  %597 = vmatpush1.msra.mxu0 %v559
  %598 = vmatprep.subr.mxu0 0.0
  %599 = vmatpush2.msra.mxu0 0.0
  %600 = vmatprep.subr.mxu0 0.0
  %601 = vmatpush2.msra.mxu0 0.0
  %602 = vmatprep.subr.mxu0 0.0
  %603 = vmatpush2.msra.mxu0 0.0
  %604 = vmatprep.subr.mxu0 0.0
  %605 = vmatpush2.msra.mxu0 0.0
  %606 = vmatprep.subr.mxu0 0.0
  %607 = vmatpush2.msra.mxu0 0.0
  %608 = vmatprep.subr.mxu0 0.0
  %609 = vmatpush2.msra.mxu0 0.0
  %610 = vmatprep.subr.mxu0 0.0
  %611 = vmatpush2.msra.mxu0 0.0
  %612 = vmatprep.subr.mxu0 0.0
  %613 = vmatpush2.msra.mxu0 0.0
  %614 = vmatprep.subr.mxu0 0.0
  %615 = vmatpush2.msra.mxu0 0.0
  %616 = vmatprep.subr.mxu0 0.0
  %617 = vmatpush2.msra.mxu0 0.0
  %618 = vmatprep.subr.mxu0 0.0
  %619 = vmatpush2.msra.mxu0 0.0
  %620 = vmatprep.subr.mxu0 0.0
  %621 = vmatpush2.msra.mxu0 0.0
  %622 = vmatprep.subr.mxu0 0.0
  %623 = vmatpush2.msra.mxu0 0.0
  %624 = vmatprep.subr.mxu0 0.0
  %625 = vmatpush2.msra.mxu0 0.0
  %626 = vmatprep.subr.mxu0 0.0
  %627 = vmatpush2.msra.mxu0 0.0
  %628 = vmatprep.subr.mxu0 0.0
  %629 = vmatpush2.msra.mxu0 0.0
  %630 = vmatprep.mubr.f32.mxu0 0.0
  %631 = vmatmul.mubr.f32.gmra.mxu0 %v564
  %v632 = vpop.f32.mrf.mxu0
  %v633 = vadd.f32 0.0, %v632
  %v634 = vpop.f32.mrf.mxu0
  %v635 = vadd.f32 0.0, %v634
  %636 = vdwg.mxu0
  %v637 = vadd.f32 %v548, %v633
  %v638 = vadd.f32 %v549, %v635
  %s639 = scalar_lea.vmem %s1, 56
  %v640 = vld [vmem:[%s639] sm:$0xff]
  %641 = vrot.lane.b32.xlu0 %v28, 95
  %v642 = vpop.permute.xlu0 %641
  %643 = vrot.lane.b32.xlu0 %v29, 95
  %v644 = vpop.permute.xlu0 %643
  %645 = vrot.lane.b32.xlu0 %v30, 95
  %v646 = vpop.permute.xlu0 %645
  %vm647 = vcmask 777216
  %v648 = vsel %vm647, %v642, %v644
  %v649 = vsel %vm647, %v644, %v646
  %v653 = vsel %vm45, %v640, 0
  %655 = vmatprep.subr.mxu0 0.0
  %656 = vmatpush1.msra.mxu0 0.0
  %657 = vmatprep.subr.mxu0 0.0
  %658 = vmatpush1.msra.mxu0 0.0
  %659 = vmatprep.subr.mxu0 0.0
  %660 = vmatpush1.msra.mxu0 0.0
  %661 = vmatprep.subr.mxu0 0.0
  %662 = vmatpush1.msra.mxu0 0.0
  %663 = vmatprep.subr.mxu0 0.0
  %664 = vmatpush1.msra.mxu0 0.0
  %665 = vmatprep.subr.mxu0 0.0
  %666 = vmatpush1.msra.mxu0 0.0
  %667 = vmatprep.subr.mxu0 0.0
  %668 = vmatpush1.msra.mxu0 0.0
  %669 = vmatprep.subr.mxu0 0.0
  %670 = vmatpush1.msra.mxu0 0.0
  %671 = vmatprep.subr.mxu0 0.0
  %672 = vmatpush1.msra.mxu0 0.0
  %673 = vmatprep.subr.mxu0 0.0
  %674 = vmatpush1.msra.mxu0 0.0
  %675 = vmatprep.subr.mxu0 0.0
  %676 = vmatpush1.msra.mxu0 0.0
  %677 = vmatprep.subr.mxu0 0.0
  %678 = vmatpush1.msra.mxu0 0.0
  %679 = vmatprep.subr.mxu0 0.0
  %680 = vmatpush1.msra.mxu0 0.0
  %681 = vmatprep.subr.mxu0 0.0
  %682 = vmatpush1.msra.mxu0 0.0
  %683 = vmatprep.subr.mxu0 0.0
  %684 = vmatpush1.msra.mxu0 0.0
  %685 = vmatprep.subr.mxu0 %v649
  %686 = vmatpush1.msra.mxu0 %v648
  %687 = vmatprep.subr.mxu0 0.0
  %688 = vmatpush2.msra.mxu0 0.0
  %689 = vmatprep.subr.mxu0 0.0
  %690 = vmatpush2.msra.mxu0 0.0
  %691 = vmatprep.subr.mxu0 0.0
  %692 = vmatpush2.msra.mxu0 0.0
  %693 = vmatprep.subr.mxu0 0.0
  %694 = vmatpush2.msra.mxu0 0.0
  %695 = vmatprep.subr.mxu0 0.0
  %696 = vmatpush2.msra.mxu0 0.0
  %697 = vmatprep.subr.mxu0 0.0
  %698 = vmatpush2.msra.mxu0 0.0
  %699 = vmatprep.subr.mxu0 0.0
  %700 = vmatpush2.msra.mxu0 0.0
  %701 = vmatprep.subr.mxu0 0.0
  %702 = vmatpush2.msra.mxu0 0.0
  %703 = vmatprep.subr.mxu0 0.0
  %704 = vmatpush2.msra.mxu0 0.0
  %705 = vmatprep.subr.mxu0 0.0
  %706 = vmatpush2.msra.mxu0 0.0
  %707 = vmatprep.subr.mxu0 0.0
  %708 = vmatpush2.msra.mxu0 0.0
  %709 = vmatprep.subr.mxu0 0.0
  %710 = vmatpush2.msra.mxu0 0.0
  %711 = vmatprep.subr.mxu0 0.0
  %712 = vmatpush2.msra.mxu0 0.0
  %713 = vmatprep.subr.mxu0 0.0
  %714 = vmatpush2.msra.mxu0 0.0
  %715 = vmatprep.subr.mxu0 0.0
  %716 = vmatpush2.msra.mxu0 0.0
  %717 = vmatprep.subr.mxu0 0.0
  %718 = vmatpush2.msra.mxu0 0.0
  %719 = vmatprep.mubr.f32.mxu0 0.0
  %720 = vmatmul.mubr.f32.gmra.mxu0 %v653
  %v721 = vpop.f32.mrf.mxu0
  %v722 = vadd.f32 0.0, %v721
  %v723 = vpop.f32.mrf.mxu0
  %v724 = vadd.f32 0.0, %v723
  %725 = vdwg.mxu0
  %v726 = vadd.f32 %v637, %v722
  %v727 = vadd.f32 %v638, %v724
  %s728 = scalar_lea.vmem %s1, 64
  %v729 = vld [vmem:[%s728] sm:$0xff]
  %730 = vrot.lane.b32.xlu0 %v28, 94
  %v731 = vpop.permute.xlu0 %730
  %732 = vrot.lane.b32.xlu0 %v29, 94
  %v733 = vpop.permute.xlu0 %732
  %734 = vrot.lane.b32.xlu0 %v30, 94
  %v735 = vpop.permute.xlu0 %734
  %vm736 = vcmask 769024
  %v737 = vsel %vm736, %v731, %v733
  %v738 = vsel %vm736, %v733, %v735
  %v742 = vsel %vm45, %v729, 0
  %744 = vmatprep.subr.mxu0 0.0
  %745 = vmatpush1.msra.mxu0 0.0
  %746 = vmatprep.subr.mxu0 0.0
  %747 = vmatpush1.msra.mxu0 0.0
  %748 = vmatprep.subr.mxu0 0.0
  %749 = vmatpush1.msra.mxu0 0.0
  %750 = vmatprep.subr.mxu0 0.0
  %751 = vmatpush1.msra.mxu0 0.0
  %752 = vmatprep.subr.mxu0 0.0
  %753 = vmatpush1.msra.mxu0 0.0
  %754 = vmatprep.subr.mxu0 0.0
  %755 = vmatpush1.msra.mxu0 0.0
  %756 = vmatprep.subr.mxu0 0.0
  %757 = vmatpush1.msra.mxu0 0.0
  %758 = vmatprep.subr.mxu0 0.0
  %759 = vmatpush1.msra.mxu0 0.0
  %760 = vmatprep.subr.mxu0 0.0
  %761 = vmatpush1.msra.mxu0 0.0
  %762 = vmatprep.subr.mxu0 0.0
  %763 = vmatpush1.msra.mxu0 0.0
  %764 = vmatprep.subr.mxu0 0.0
  %765 = vmatpush1.msra.mxu0 0.0
  %766 = vmatprep.subr.mxu0 0.0
  %767 = vmatpush1.msra.mxu0 0.0
  %768 = vmatprep.subr.mxu0 0.0
  %769 = vmatpush1.msra.mxu0 0.0
  %770 = vmatprep.subr.mxu0 0.0
  %771 = vmatpush1.msra.mxu0 0.0
  %772 = vmatprep.subr.mxu0 0.0
  %773 = vmatpush1.msra.mxu0 0.0
  %774 = vmatprep.subr.mxu0 %v738
  %775 = vmatpush1.msra.mxu0 %v737
  %776 = vmatprep.subr.mxu0 0.0
  %777 = vmatpush2.msra.mxu0 0.0
  %778 = vmatprep.subr.mxu0 0.0
  %779 = vmatpush2.msra.mxu0 0.0
  %780 = vmatprep.subr.mxu0 0.0
  %781 = vmatpush2.msra.mxu0 0.0
  %782 = vmatprep.subr.mxu0 0.0
  %783 = vmatpush2.msra.mxu0 0.0
  %784 = vmatprep.subr.mxu0 0.0
  %785 = vmatpush2.msra.mxu0 0.0
  %786 = vmatprep.subr.mxu0 0.0
  %787 = vmatpush2.msra.mxu0 0.0
  %788 = vmatprep.subr.mxu0 0.0
  %789 = vmatpush2.msra.mxu0 0.0
  %790 = vmatprep.subr.mxu0 0.0
  %791 = vmatpush2.msra.mxu0 0.0
  %792 = vmatprep.subr.mxu0 0.0
  %793 = vmatpush2.msra.mxu0 0.0
  %794 = vmatprep.subr.mxu0 0.0
  %795 = vmatpush2.msra.mxu0 0.0
  %796 = vmatprep.subr.mxu0 0.0
  %797 = vmatpush2.msra.mxu0 0.0
  %798 = vmatprep.subr.mxu0 0.0
  %799 = vmatpush2.msra.mxu0 0.0
  %800 = vmatprep.subr.mxu0 0.0
  %801 = vmatpush2.msra.mxu0 0.0
  %802 = vmatprep.subr.mxu0 0.0
  %803 = vmatpush2.msra.mxu0 0.0
  %804 = vmatprep.subr.mxu0 0.0
  %805 = vmatpush2.msra.mxu0 0.0
  %806 = vmatprep.subr.mxu0 0.0
  %807 = vmatpush2.msra.mxu0 0.0
  %808 = vmatprep.mubr.f32.mxu0 0.0
  %809 = vmatmul.mubr.f32.gmra.mxu0 %v742
  %v810 = vpop.f32.mrf.mxu0
  %v811 = vadd.f32 0.0, %v810
  %v812 = vpop.f32.mrf.mxu0
  %v813 = vadd.f32 0.0, %v812
  %814 = vdwg.mxu0
  %v815 = vadd.f32 %v726, %v811
  %v816 = vadd.f32 %v727, %v813
  %v817 = vld [vmem:[%s2] sm:$0xff]
  %819 = vset.pattern.permute.xlu0 0
  %820 = vperm.xlu0 %819, %v817
  %v821 = vpop.permute.xlu0 %820
  %v823 = vadd.f32 %v815, %v821
  %v824 = vadd.f32 %v816, %v821
  %825 = vst [vmem:[%s3] sm:$0xff] %v823
  %826 = vst [vmem:[%s3 + $0x8] sm:$0xff] %v824
  %s827 = scalar_lea.vmem %s0, 8
  %v828 = vld [vmem:[%s827] sm:$0xff]
  %v830 = vcombine.high %v828, %v828
  %832 = vst [vmem:[#allocation2] sm:$0xf] %v828
  %833 = vst [vmem:[#allocation2 + $0x8] sm:$0xf] %v830
  %v834 = vld [vmem:[%s1] sm:$0xff]
  %v835 = vld [vmem:[#allocation2] sm:$0xff]
  %v836 = vld [vmem:[#allocation2 + $0x8] sm:$0xff]
  %v837 = vld [vmem:[%s26] sm:$0xff]
  %v838 = vld [vmem:[#allocation2] sm:$0xff]
  %v839 = vld [vmem:[#allocation2 + $0x8] sm:$0xff]
  %v840 = vld [vmem:[#allocation2 + $0x10] sm:$0xff]
  %844 = vrot.lane.b32.xlu0 %v838, 127
  %v845 = vpop.permute.xlu0 %844
  %846 = vrot.lane.b32.xlu0 %v839, 127
  %v847 = vpop.permute.xlu0 %846
  %848 = vrot.lane.b32.xlu0 %v840, 127
  %v849 = vpop.permute.xlu0 %848
  %v850 = vsel %vm40, %v845, %v847
  %v851 = vsel %vm40, %v847, %v849
  %v855 = vsel %vm45, %v837, 0
  %857 = vmatprep.subr.mxu0 0.0
  %858 = vmatpush1.msra.mxu0 0.0
  %859 = vmatprep.subr.mxu0 0.0
  %860 = vmatpush1.msra.mxu0 0.0
  %861 = vmatprep.subr.mxu0 0.0
  %862 = vmatpush1.msra.mxu0 0.0
  %863 = vmatprep.subr.mxu0 0.0
  %864 = vmatpush1.msra.mxu0 0.0
  %865 = vmatprep.subr.mxu0 0.0
  %866 = vmatpush1.msra.mxu0 0.0
  %867 = vmatprep.subr.mxu0 0.0
  %868 = vmatpush1.msra.mxu0 0.0
  %869 = vmatprep.subr.mxu0 0.0
  %870 = vmatpush1.msra.mxu0 0.0
  %871 = vmatprep.subr.mxu0 0.0
  %872 = vmatpush1.msra.mxu0 0.0
  %873 = vmatprep.subr.mxu0 0.0
  %874 = vmatpush1.msra.mxu0 0.0
  %875 = vmatprep.subr.mxu0 0.0
  %876 = vmatpush1.msra.mxu0 0.0
  %877 = vmatprep.subr.mxu0 0.0
  %878 = vmatpush1.msra.mxu0 0.0
  %879 = vmatprep.subr.mxu0 0.0
  %880 = vmatpush1.msra.mxu0 0.0
  %881 = vmatprep.subr.mxu0 0.0
  %882 = vmatpush1.msra.mxu0 0.0
  %883 = vmatprep.subr.mxu0 0.0
  %884 = vmatpush1.msra.mxu0 0.0
  %885 = vmatprep.subr.mxu0 0.0
  %886 = vmatpush1.msra.mxu0 0.0
  %887 = vmatprep.subr.mxu0 %v851
  %888 = vmatpush1.msra.mxu0 %v850
  %889 = vmatprep.subr.mxu0 0.0
  %890 = vmatpush2.msra.mxu0 0.0
  %891 = vmatprep.subr.mxu0 0.0
  %892 = vmatpush2.msra.mxu0 0.0
  %893 = vmatprep.subr.mxu0 0.0
  %894 = vmatpush2.msra.mxu0 0.0
  %895 = vmatprep.subr.mxu0 0.0
  %896 = vmatpush2.msra.mxu0 0.0
  %897 = vmatprep.subr.mxu0 0.0
  %898 = vmatpush2.msra.mxu0 0.0
  %899 = vmatprep.subr.mxu0 0.0
  %900 = vmatpush2.msra.mxu0 0.0
  %901 = vmatprep.subr.mxu0 0.0
  %902 = vmatpush2.msra.mxu0 0.0
  %903 = vmatprep.subr.mxu0 0.0
  %904 = vmatpush2.msra.mxu0 0.0
  %905 = vmatprep.subr.mxu0 0.0
  %906 = vmatpush2.msra.mxu0 0.0
  %907 = vmatprep.subr.mxu0 0.0
  %908 = vmatpush2.msra.mxu0 0.0
  %909 = vmatprep.subr.mxu0 0.0
  %910 = vmatpush2.msra.mxu0 0.0
  %911 = vmatprep.subr.mxu0 0.0
  %912 = vmatpush2.msra.mxu0 0.0
  %913 = vmatprep.subr.mxu0 0.0
  %914 = vmatpush2.msra.mxu0 0.0
  %915 = vmatprep.subr.mxu0 0.0
  %916 = vmatpush2.msra.mxu0 0.0
  %917 = vmatprep.subr.mxu0 0.0
  %918 = vmatpush2.msra.mxu0 0.0
  %919 = vmatprep.subr.mxu0 0.0
  %920 = vmatpush2.msra.mxu0 0.0
  %921 = vmatprep.mubr.f32.mxu0 0.0
  %922 = vmatmul.mubr.f32.gmra.mxu0 %v855
  %v923 = vpop.f32.mrf.mxu0
  %v924 = vadd.f32 0.0, %v923
  %v925 = vpop.f32.mrf.mxu0
  %v926 = vadd.f32 0.0, %v925
  %927 = vdwg.mxu0
  %v929 = vsel %vm45, %v834, 0
  %931 = vmatprep.subr.mxu0 0.0
  %932 = vmatpush1.msra.mxu0 0.0
  %933 = vmatprep.subr.mxu0 0.0
  %934 = vmatpush1.msra.mxu0 0.0
  %935 = vmatprep.subr.mxu0 0.0
  %936 = vmatpush1.msra.mxu0 0.0
  %937 = vmatprep.subr.mxu0 0.0
  %938 = vmatpush1.msra.mxu0 0.0
  %939 = vmatprep.subr.mxu0 0.0
  %940 = vmatpush1.msra.mxu0 0.0
  %941 = vmatprep.subr.mxu0 0.0
  %942 = vmatpush1.msra.mxu0 0.0
  %943 = vmatprep.subr.mxu0 0.0
  %944 = vmatpush1.msra.mxu0 0.0
  %945 = vmatprep.subr.mxu0 0.0
  %946 = vmatpush1.msra.mxu0 0.0
  %947 = vmatprep.subr.mxu0 0.0
  %948 = vmatpush1.msra.mxu0 0.0
  %949 = vmatprep.subr.mxu0 0.0
  %950 = vmatpush1.msra.mxu0 0.0
  %951 = vmatprep.subr.mxu0 0.0
  %952 = vmatpush1.msra.mxu0 0.0
  %953 = vmatprep.subr.mxu0 0.0
  %954 = vmatpush1.msra.mxu0 0.0
  %955 = vmatprep.subr.mxu0 0.0
  %956 = vmatpush1.msra.mxu0 0.0
  %957 = vmatprep.subr.mxu0 0.0
  %958 = vmatpush1.msra.mxu0 0.0
  %959 = vmatprep.subr.mxu0 0.0
  %960 = vmatpush1.msra.mxu0 0.0
  %961 = vmatprep.subr.mxu0 %v836
  %962 = vmatpush1.msra.mxu0 %v835
  %963 = vmatprep.subr.mxu0 0.0
  %964 = vmatpush2.msra.mxu0 0.0
  %965 = vmatprep.subr.mxu0 0.0
  %966 = vmatpush2.msra.mxu0 0.0
  %967 = vmatprep.subr.mxu0 0.0
  %968 = vmatpush2.msra.mxu0 0.0
  %969 = vmatprep.subr.mxu0 0.0
  %970 = vmatpush2.msra.mxu0 0.0
  %971 = vmatprep.subr.mxu0 0.0
  %972 = vmatpush2.msra.mxu0 0.0
  %973 = vmatprep.subr.mxu0 0.0
  %974 = vmatpush2.msra.mxu0 0.0
  %975 = vmatprep.subr.mxu0 0.0
  %976 = vmatpush2.msra.mxu0 0.0
  %977 = vmatprep.subr.mxu0 0.0
  %978 = vmatpush2.msra.mxu0 0.0
  %979 = vmatprep.subr.mxu0 0.0
  %980 = vmatpush2.msra.mxu0 0.0
  %981 = vmatprep.subr.mxu0 0.0
  %982 = vmatpush2.msra.mxu0 0.0
  %983 = vmatprep.subr.mxu0 0.0
  %984 = vmatpush2.msra.mxu0 0.0
  %985 = vmatprep.subr.mxu0 0.0
  %986 = vmatpush2.msra.mxu0 0.0
  %987 = vmatprep.subr.mxu0 0.0
  %988 = vmatpush2.msra.mxu0 0.0
  %989 = vmatprep.subr.mxu0 0.0
  %990 = vmatpush2.msra.mxu0 0.0
  %991 = vmatprep.subr.mxu0 0.0
  %992 = vmatpush2.msra.mxu0 0.0
  %993 = vmatprep.subr.mxu0 0.0
  %994 = vmatpush2.msra.mxu0 0.0
  %995 = vmatprep.mubr.f32.mxu0 0.0
  %996 = vmatmul.mubr.f32.gmra.mxu0 %v929
  %v997 = vpop.f32.mrf.mxu0
  %v998 = vadd.f32 %v924, %v997
  %v999 = vpop.f32.mrf.mxu0
  %v1000 = vadd.f32 %v926, %v999
  %1001 = vdwg.mxu0
  %v1002 = vld [vmem:[%s194] sm:$0xff]
  %1003 = vrot.lane.b32.xlu0 %v838, 126
  %v1004 = vpop.permute.xlu0 %1003
  %1005 = vrot.lane.b32.xlu0 %v839, 126
  %v1006 = vpop.permute.xlu0 %1005
  %1007 = vrot.lane.b32.xlu0 %v840, 126
  %v1008 = vpop.permute.xlu0 %1007
  %v1009 = vsel %vm202, %v1004, %v1006
  %v1010 = vsel %vm202, %v1006, %v1008
  %v1014 = vsel %vm45, %v1002, 0
  %1016 = vmatprep.subr.mxu0 0.0
  %1017 = vmatpush1.msra.mxu0 0.0
  %1018 = vmatprep.subr.mxu0 0.0
  %1019 = vmatpush1.msra.mxu0 0.0
  %1020 = vmatprep.subr.mxu0 0.0
  %1021 = vmatpush1.msra.mxu0 0.0
  %1022 = vmatprep.subr.mxu0 0.0
  %1023 = vmatpush1.msra.mxu0 0.0
  %1024 = vmatprep.subr.mxu0 0.0
  %1025 = vmatpush1.msra.mxu0 0.0
  %1026 = vmatprep.subr.mxu0 0.0
  %1027 = vmatpush1.msra.mxu0 0.0
  %1028 = vmatprep.subr.mxu0 0.0
  %1029 = vmatpush1.msra.mxu0 0.0
  %1030 = vmatprep.subr.mxu0 0.0
  %1031 = vmatpush1.msra.mxu0 0.0
  %1032 = vmatprep.subr.mxu0 0.0
  %1033 = vmatpush1.msra.mxu0 0.0
  %1034 = vmatprep.subr.mxu0 0.0
  %1035 = vmatpush1.msra.mxu0 0.0
  %1036 = vmatprep.subr.mxu0 0.0
  %1037 = vmatpush1.msra.mxu0 0.0
  %1038 = vmatprep.subr.mxu0 0.0
  %1039 = vmatpush1.msra.mxu0 0.0
  %1040 = vmatprep.subr.mxu0 0.0
  %1041 = vmatpush1.msra.mxu0 0.0
  %1042 = vmatprep.subr.mxu0 0.0
  %1043 = vmatpush1.msra.mxu0 0.0
  %1044 = vmatprep.subr.mxu0 0.0
  %1045 = vmatpush1.msra.mxu0 0.0
  %1046 = vmatprep.subr.mxu0 %v1010
  %1047 = vmatpush1.msra.mxu0 %v1009
  %1048 = vmatprep.subr.mxu0 0.0
  %1049 = vmatpush2.msra.mxu0 0.0
  %1050 = vmatprep.subr.mxu0 0.0
  %1051 = vmatpush2.msra.mxu0 0.0
  %1052 = vmatprep.subr.mxu0 0.0
  %1053 = vmatpush2.msra.mxu0 0.0
  %1054 = vmatprep.subr.mxu0 0.0
  %1055 = vmatpush2.msra.mxu0 0.0
  %1056 = vmatprep.subr.mxu0 0.0
  %1057 = vmatpush2.msra.mxu0 0.0
  %1058 = vmatprep.subr.mxu0 0.0
  %1059 = vmatpush2.msra.mxu0 0.0
  %1060 = vmatprep.subr.mxu0 0.0
  %1061 = vmatpush2.msra.mxu0 0.0
  %1062 = vmatprep.subr.mxu0 0.0
  %1063 = vmatpush2.msra.mxu0 0.0
  %1064 = vmatprep.subr.mxu0 0.0
  %1065 = vmatpush2.msra.mxu0 0.0
  %1066 = vmatprep.subr.mxu0 0.0
  %1067 = vmatpush2.msra.mxu0 0.0
  %1068 = vmatprep.subr.mxu0 0.0
  %1069 = vmatpush2.msra.mxu0 0.0
  %1070 = vmatprep.subr.mxu0 0.0
  %1071 = vmatpush2.msra.mxu0 0.0
  %1072 = vmatprep.subr.mxu0 0.0
  %1073 = vmatpush2.msra.mxu0 0.0
  %1074 = vmatprep.subr.mxu0 0.0
  %1075 = vmatpush2.msra.mxu0 0.0
  %1076 = vmatprep.subr.mxu0 0.0
  %1077 = vmatpush2.msra.mxu0 0.0
  %1078 = vmatprep.subr.mxu0 0.0
  %1079 = vmatpush2.msra.mxu0 0.0
  %1080 = vmatprep.mubr.f32.mxu0 0.0
  %1081 = vmatmul.mubr.f32.gmra.mxu0 %v1014
  %v1082 = vpop.f32.mrf.mxu0
  %v1083 = vadd.f32 0.0, %v1082
  %v1084 = vpop.f32.mrf.mxu0
  %v1085 = vadd.f32 0.0, %v1084
  %1086 = vdwg.mxu0
  %v1087 = vadd.f32 %v998, %v1083
  %v1088 = vadd.f32 %v1000, %v1085
  %v1089 = vld [vmem:[%s283] sm:$0xff]
  %1090 = vrot.lane.b32.xlu0 %v838, 112
  %v1091 = vpop.permute.xlu0 %1090
  %1092 = vrot.lane.b32.xlu0 %v839, 112
  %v1093 = vpop.permute.xlu0 %1092
  %1094 = vrot.lane.b32.xlu0 %v840, 112
  %v1095 = vpop.permute.xlu0 %1094
  %v1096 = vsel %vm291, %v1091, %v1093
  %v1097 = vsel %vm291, %v1093, %v1095
  %v1101 = vsel %vm45, %v1089, 0
  %1103 = vmatprep.subr.mxu0 0.0
  %1104 = vmatpush1.msra.mxu0 0.0
  %1105 = vmatprep.subr.mxu0 0.0
  %1106 = vmatpush1.msra.mxu0 0.0
  %1107 = vmatprep.subr.mxu0 0.0
  %1108 = vmatpush1.msra.mxu0 0.0
  %1109 = vmatprep.subr.mxu0 0.0
  %1110 = vmatpush1.msra.mxu0 0.0
  %1111 = vmatprep.subr.mxu0 0.0
  %1112 = vmatpush1.msra.mxu0 0.0
  %1113 = vmatprep.subr.mxu0 0.0
  %1114 = vmatpush1.msra.mxu0 0.0
  %1115 = vmatprep.subr.mxu0 0.0
  %1116 = vmatpush1.msra.mxu0 0.0
  %1117 = vmatprep.subr.mxu0 0.0
  %1118 = vmatpush1.msra.mxu0 0.0
  %1119 = vmatprep.subr.mxu0 0.0
  %1120 = vmatpush1.msra.mxu0 0.0
  %1121 = vmatprep.subr.mxu0 0.0
  %1122 = vmatpush1.msra.mxu0 0.0
  %1123 = vmatprep.subr.mxu0 0.0
  %1124 = vmatpush1.msra.mxu0 0.0
  %1125 = vmatprep.subr.mxu0 0.0
  %1126 = vmatpush1.msra.mxu0 0.0
  %1127 = vmatprep.subr.mxu0 0.0
  %1128 = vmatpush1.msra.mxu0 0.0
  %1129 = vmatprep.subr.mxu0 0.0
  %1130 = vmatpush1.msra.mxu0 0.0
  %1131 = vmatprep.subr.mxu0 0.0
  %1132 = vmatpush1.msra.mxu0 0.0
  %1133 = vmatprep.subr.mxu0 %v1097
  %1134 = vmatpush1.msra.mxu0 %v1096
  %1135 = vmatprep.subr.mxu0 0.0
  %1136 = vmatpush2.msra.mxu0 0.0
  %1137 = vmatprep.subr.mxu0 0.0
  %1138 = vmatpush2.msra.mxu0 0.0
  %1139 = vmatprep.subr.mxu0 0.0
  %1140 = vmatpush2.msra.mxu0 0.0
  %1141 = vmatprep.subr.mxu0 0.0
  %1142 = vmatpush2.msra.mxu0 0.0
  %1143 = vmatprep.subr.mxu0 0.0
  %1144 = vmatpush2.msra.mxu0 0.0
  %1145 = vmatprep.subr.mxu0 0.0
  %1146 = vmatpush2.msra.mxu0 0.0
  %1147 = vmatprep.subr.mxu0 0.0
  %1148 = vmatpush2.msra.mxu0 0.0
  %1149 = vmatprep.subr.mxu0 0.0
  %1150 = vmatpush2.msra.mxu0 0.0
  %1151 = vmatprep.subr.mxu0 0.0
  %1152 = vmatpush2.msra.mxu0 0.0
  %1153 = vmatprep.subr.mxu0 0.0
  %1154 = vmatpush2.msra.mxu0 0.0
  %1155 = vmatprep.subr.mxu0 0.0
  %1156 = vmatpush2.msra.mxu0 0.0
  %1157 = vmatprep.subr.mxu0 0.0
  %1158 = vmatpush2.msra.mxu0 0.0
  %1159 = vmatprep.subr.mxu0 0.0
  %1160 = vmatpush2.msra.mxu0 0.0
  %1161 = vmatprep.subr.mxu0 0.0
  %1162 = vmatpush2.msra.mxu0 0.0
  %1163 = vmatprep.subr.mxu0 0.0
  %1164 = vmatpush2.msra.mxu0 0.0
  %1165 = vmatprep.subr.mxu0 0.0
  %1166 = vmatpush2.msra.mxu0 0.0
  %1167 = vmatprep.mubr.f32.mxu0 0.0
  %1168 = vmatmul.mubr.f32.gmra.mxu0 %v1101
  %v1169 = vpop.f32.mrf.mxu0
  %v1170 = vadd.f32 0.0, %v1169
  %v1171 = vpop.f32.mrf.mxu0
  %v1172 = vadd.f32 0.0, %v1171
  %1173 = vdwg.mxu0
  %v1174 = vadd.f32 %v1087, %v1170
  %v1175 = vadd.f32 %v1088, %v1172
  %v1176 = vld [vmem:[%s372] sm:$0xff]
  %1177 = vrot.lane.b32.xlu0 %v838, 111
  %v1178 = vpop.permute.xlu0 %1177
  %1179 = vrot.lane.b32.xlu0 %v839, 111
  %v1180 = vpop.permute.xlu0 %1179
  %1181 = vrot.lane.b32.xlu0 %v840, 111
  %v1182 = vpop.permute.xlu0 %1181
  %v1183 = vsel %vm380, %v1178, %v1180
  %v1184 = vsel %vm380, %v1180, %v1182
  %v1188 = vsel %vm45, %v1176, 0
  %1190 = vmatprep.subr.mxu0 0.0
  %1191 = vmatpush1.msra.mxu0 0.0
  %1192 = vmatprep.subr.mxu0 0.0
  %1193 = vmatpush1.msra.mxu0 0.0
  %1194 = vmatprep.subr.mxu0 0.0
  %1195 = vmatpush1.msra.mxu0 0.0
  %1196 = vmatprep.subr.mxu0 0.0
  %1197 = vmatpush1.msra.mxu0 0.0
  %1198 = vmatprep.subr.mxu0 0.0
  %1199 = vmatpush1.msra.mxu0 0.0
  %1200 = vmatprep.subr.mxu0 0.0
  %1201 = vmatpush1.msra.mxu0 0.0
  %1202 = vmatprep.subr.mxu0 0.0
  %1203 = vmatpush1.msra.mxu0 0.0
  %1204 = vmatprep.subr.mxu0 0.0
  %1205 = vmatpush1.msra.mxu0 0.0
  %1206 = vmatprep.subr.mxu0 0.0
  %1207 = vmatpush1.msra.mxu0 0.0
  %1208 = vmatprep.subr.mxu0 0.0
  %1209 = vmatpush1.msra.mxu0 0.0
  %1210 = vmatprep.subr.mxu0 0.0
  %1211 = vmatpush1.msra.mxu0 0.0
  %1212 = vmatprep.subr.mxu0 0.0
  %1213 = vmatpush1.msra.mxu0 0.0
  %1214 = vmatprep.subr.mxu0 0.0
  %1215 = vmatpush1.msra.mxu0 0.0
  %1216 = vmatprep.subr.mxu0 0.0
  %1217 = vmatpush1.msra.mxu0 0.0
  %1218 = vmatprep.subr.mxu0 0.0
  %1219 = vmatpush1.msra.mxu0 0.0
  %1220 = vmatprep.subr.mxu0 %v1184
  %1221 = vmatpush1.msra.mxu0 %v1183
  %1222 = vmatprep.subr.mxu0 0.0
  %1223 = vmatpush2.msra.mxu0 0.0
  %1224 = vmatprep.subr.mxu0 0.0
  %1225 = vmatpush2.msra.mxu0 0.0
  %1226 = vmatprep.subr.mxu0 0.0
  %1227 = vmatpush2.msra.mxu0 0.0
  %1228 = vmatprep.subr.mxu0 0.0
  %1229 = vmatpush2.msra.mxu0 0.0
  %1230 = vmatprep.subr.mxu0 0.0
  %1231 = vmatpush2.msra.mxu0 0.0
  %1232 = vmatprep.subr.mxu0 0.0
  %1233 = vmatpush2.msra.mxu0 0.0
  %1234 = vmatprep.subr.mxu0 0.0
  %1235 = vmatpush2.msra.mxu0 0.0
  %1236 = vmatprep.subr.mxu0 0.0
  %1237 = vmatpush2.msra.mxu0 0.0
  %1238 = vmatprep.subr.mxu0 0.0
  %1239 = vmatpush2.msra.mxu0 0.0
  %1240 = vmatprep.subr.mxu0 0.0
  %1241 = vmatpush2.msra.mxu0 0.0
  %1242 = vmatprep.subr.mxu0 0.0
  %1243 = vmatpush2.msra.mxu0 0.0
  %1244 = vmatprep.subr.mxu0 0.0
  %1245 = vmatpush2.msra.mxu0 0.0
  %1246 = vmatprep.subr.mxu0 0.0
  %1247 = vmatpush2.msra.mxu0 0.0
  %1248 = vmatprep.subr.mxu0 0.0
  %1249 = vmatpush2.msra.mxu0 0.0
  %1250 = vmatprep.subr.mxu0 0.0
  %1251 = vmatpush2.msra.mxu0 0.0
  %1252 = vmatprep.subr.mxu0 0.0
  %1253 = vmatpush2.msra.mxu0 0.0
  %1254 = vmatprep.mubr.f32.mxu0 0.0
  %1255 = vmatmul.mubr.f32.gmra.mxu0 %v1188
  %v1256 = vpop.f32.mrf.mxu0
  %v1257 = vadd.f32 0.0, %v1256
  %v1258 = vpop.f32.mrf.mxu0
  %v1259 = vadd.f32 0.0, %v1258
  %1260 = vdwg.mxu0
  %v1261 = vadd.f32 %v1174, %v1257
  %v1262 = vadd.f32 %v1175, %v1259
  %v1263 = vld [vmem:[%s461] sm:$0xff]
  %1264 = vrot.lane.b32.xlu0 %v838, 110
  %v1265 = vpop.permute.xlu0 %1264
  %1266 = vrot.lane.b32.xlu0 %v839, 110
  %v1267 = vpop.permute.xlu0 %1266
  %1268 = vrot.lane.b32.xlu0 %v840, 110
  %v1269 = vpop.permute.xlu0 %1268
  %v1270 = vsel %vm469, %v1265, %v1267
  %v1271 = vsel %vm469, %v1267, %v1269
  %v1275 = vsel %vm45, %v1263, 0
  %1277 = vmatprep.subr.mxu0 0.0
  %1278 = vmatpush1.msra.mxu0 0.0
  %1279 = vmatprep.subr.mxu0 0.0
  %1280 = vmatpush1.msra.mxu0 0.0
  %1281 = vmatprep.subr.mxu0 0.0
  %1282 = vmatpush1.msra.mxu0 0.0
  %1283 = vmatprep.subr.mxu0 0.0
  %1284 = vmatpush1.msra.mxu0 0.0
  %1285 = vmatprep.subr.mxu0 0.0
  %1286 = vmatpush1.msra.mxu0 0.0
  %1287 = vmatprep.subr.mxu0 0.0
  %1288 = vmatpush1.msra.mxu0 0.0
  %1289 = vmatprep.subr.mxu0 0.0
  %1290 = vmatpush1.msra.mxu0 0.0
  %1291 = vmatprep.subr.mxu0 0.0
  %1292 = vmatpush1.msra.mxu0 0.0
  %1293 = vmatprep.subr.mxu0 0.0
  %1294 = vmatpush1.msra.mxu0 0.0
  %1295 = vmatprep.subr.mxu0 0.0
  %1296 = vmatpush1.msra.mxu0 0.0
  %1297 = vmatprep.subr.mxu0 0.0
  %1298 = vmatpush1.msra.mxu0 0.0
  %1299 = vmatprep.subr.mxu0 0.0
  %1300 = vmatpush1.msra.mxu0 0.0
  %1301 = vmatprep.subr.mxu0 0.0
  %1302 = vmatpush1.msra.mxu0 0.0
  %1303 = vmatprep.subr.mxu0 0.0
  %1304 = vmatpush1.msra.mxu0 0.0
  %1305 = vmatprep.subr.mxu0 0.0
  %1306 = vmatpush1.msra.mxu0 0.0
  %1307 = vmatprep.subr.mxu0 %v1271
  %1308 = vmatpush1.msra.mxu0 %v1270
  %1309 = vmatprep.subr.mxu0 0.0
  %1310 = vmatpush2.msra.mxu0 0.0
  %1311 = vmatprep.subr.mxu0 0.0
  %1312 = vmatpush2.msra.mxu0 0.0
  %1313 = vmatprep.subr.mxu0 0.0
  %1314 = vmatpush2.msra.mxu0 0.0
  %1315 = vmatprep.subr.mxu0 0.0
  %1316 = vmatpush2.msra.mxu0 0.0
  %1317 = vmatprep.subr.mxu0 0.0
  %1318 = vmatpush2.msra.mxu0 0.0
  %1319 = vmatprep.subr.mxu0 0.0
  %1320 = vmatpush2.msra.mxu0 0.0
  %1321 = vmatprep.subr.mxu0 0.0
  %1322 = vmatpush2.msra.mxu0 0.0
  %1323 = vmatprep.subr.mxu0 0.0
  %1324 = vmatpush2.msra.mxu0 0.0
  %1325 = vmatprep.subr.mxu0 0.0
  %1326 = vmatpush2.msra.mxu0 0.0
  %1327 = vmatprep.subr.mxu0 0.0
  %1328 = vmatpush2.msra.mxu0 0.0
  %1329 = vmatprep.subr.mxu0 0.0
  %1330 = vmatpush2.msra.mxu0 0.0
  %1331 = vmatprep.subr.mxu0 0.0
  %1332 = vmatpush2.msra.mxu0 0.0
  %1333 = vmatprep.subr.mxu0 0.0
  %1334 = vmatpush2.msra.mxu0 0.0
  %1335 = vmatprep.subr.mxu0 0.0
  %1336 = vmatpush2.msra.mxu0 0.0
  %1337 = vmatprep.subr.mxu0 0.0
  %1338 = vmatpush2.msra.mxu0 0.0
  %1339 = vmatprep.subr.mxu0 0.0
  %1340 = vmatpush2.msra.mxu0 0.0
  %1341 = vmatprep.mubr.f32.mxu0 0.0
  %1342 = vmatmul.mubr.f32.gmra.mxu0 %v1275
  %v1343 = vpop.f32.mrf.mxu0
  %v1344 = vadd.f32 0.0, %v1343
  %v1345 = vpop.f32.mrf.mxu0
  %v1346 = vadd.f32 0.0, %v1345
  %1347 = vdwg.mxu0
  %v1348 = vadd.f32 %v1261, %v1344
  %v1349 = vadd.f32 %v1262, %v1346
  %v1350 = vld [vmem:[%s550] sm:$0xff]
  %1351 = vrot.lane.b32.xlu0 %v838, 96
  %v1352 = vpop.permute.xlu0 %1351
  %1353 = vrot.lane.b32.xlu0 %v839, 96
  %v1354 = vpop.permute.xlu0 %1353
  %1355 = vrot.lane.b32.xlu0 %v840, 96
  %v1356 = vpop.permute.xlu0 %1355
  %v1357 = vsel %vm558, %v1352, %v1354
  %v1358 = vsel %vm558, %v1354, %v1356
  %v1362 = vsel %vm45, %v1350, 0
  %1364 = vmatprep.subr.mxu0 0.0
  %1365 = vmatpush1.msra.mxu0 0.0
  %1366 = vmatprep.subr.mxu0 0.0
  %1367 = vmatpush1.msra.mxu0 0.0
  %1368 = vmatprep.subr.mxu0 0.0
  %1369 = vmatpush1.msra.mxu0 0.0
  %1370 = vmatprep.subr.mxu0 0.0
  %1371 = vmatpush1.msra.mxu0 0.0
  %1372 = vmatprep.subr.mxu0 0.0
  %1373 = vmatpush1.msra.mxu0 0.0
  %1374 = vmatprep.subr.mxu0 0.0
  %1375 = vmatpush1.msra.mxu0 0.0
  %1376 = vmatprep.subr.mxu0 0.0
  %1377 = vmatpush1.msra.mxu0 0.0
  %1378 = vmatprep.subr.mxu0 0.0
  %1379 = vmatpush1.msra.mxu0 0.0
  %1380 = vmatprep.subr.mxu0 0.0
  %1381 = vmatpush1.msra.mxu0 0.0
  %1382 = vmatprep.subr.mxu0 0.0
  %1383 = vmatpush1.msra.mxu0 0.0
  %1384 = vmatprep.subr.mxu0 0.0
  %1385 = vmatpush1.msra.mxu0 0.0
  %1386 = vmatprep.subr.mxu0 0.0
  %1387 = vmatpush1.msra.mxu0 0.0
  %1388 = vmatprep.subr.mxu0 0.0
  %1389 = vmatpush1.msra.mxu0 0.0
  %1390 = vmatprep.subr.mxu0 0.0
  %1391 = vmatpush1.msra.mxu0 0.0
  %1392 = vmatprep.subr.mxu0 0.0
  %1393 = vmatpush1.msra.mxu0 0.0
  %1394 = vmatprep.subr.mxu0 %v1358
  %1395 = vmatpush1.msra.mxu0 %v1357
  %1396 = vmatprep.subr.mxu0 0.0
  %1397 = vmatpush2.msra.mxu0 0.0
  %1398 = vmatprep.subr.mxu0 0.0
  %1399 = vmatpush2.msra.mxu0 0.0
  %1400 = vmatprep.subr.mxu0 0.0
  %1401 = vmatpush2.msra.mxu0 0.0
  %1402 = vmatprep.subr.mxu0 0.0
  %1403 = vmatpush2.msra.mxu0 0.0
  %1404 = vmatprep.subr.mxu0 0.0
  %1405 = vmatpush2.msra.mxu0 0.0
  %1406 = vmatprep.subr.mxu0 0.0
  %1407 = vmatpush2.msra.mxu0 0.0
  %1408 = vmatprep.subr.mxu0 0.0
  %1409 = vmatpush2.msra.mxu0 0.0
  %1410 = vmatprep.subr.mxu0 0.0
  %1411 = vmatpush2.msra.mxu0 0.0
  %1412 = vmatprep.subr.mxu0 0.0
  %1413 = vmatpush2.msra.mxu0 0.0
  %1414 = vmatprep.subr.mxu0 0.0
  %1415 = vmatpush2.msra.mxu0 0.0
  %1416 = vmatprep.subr.mxu0 0.0
  %1417 = vmatpush2.msra.mxu0 0.0
  %1418 = vmatprep.subr.mxu0 0.0
  %1419 = vmatpush2.msra.mxu0 0.0
  %1420 = vmatprep.subr.mxu0 0.0
  %1421 = vmatpush2.msra.mxu0 0.0
  %1422 = vmatprep.subr.mxu0 0.0
  %1423 = vmatpush2.msra.mxu0 0.0
  %1424 = vmatprep.subr.mxu0 0.0
  %1425 = vmatpush2.msra.mxu0 0.0
  %1426 = vmatprep.subr.mxu0 0.0
  %1427 = vmatpush2.msra.mxu0 0.0
  %1428 = vmatprep.mubr.f32.mxu0 0.0
  %1429 = vmatmul.mubr.f32.gmra.mxu0 %v1362
  %v1430 = vpop.f32.mrf.mxu0
  %v1431 = vadd.f32 0.0, %v1430
  %v1432 = vpop.f32.mrf.mxu0
  %v1433 = vadd.f32 0.0, %v1432
  %1434 = vdwg.mxu0
  %v1435 = vadd.f32 %v1348, %v1431
  %v1436 = vadd.f32 %v1349, %v1433
  %v1437 = vld [vmem:[%s639] sm:$0xff]
  %1438 = vrot.lane.b32.xlu0 %v838, 95
  %v1439 = vpop.permute.xlu0 %1438
  %1440 = vrot.lane.b32.xlu0 %v839, 95
  %v1441 = vpop.permute.xlu0 %1440
  %1442 = vrot.lane.b32.xlu0 %v840, 95
  %v1443 = vpop.permute.xlu0 %1442
  %v1444 = vsel %vm647, %v1439, %v1441
  %v1445 = vsel %vm647, %v1441, %v1443
  %v1449 = vsel %vm45, %v1437, 0
  %1451 = vmatprep.subr.mxu0 0.0
  %1452 = vmatpush1.msra.mxu0 0.0
  %1453 = vmatprep.subr.mxu0 0.0
  %1454 = vmatpush1.msra.mxu0 0.0
  %1455 = vmatprep.subr.mxu0 0.0
  %1456 = vmatpush1.msra.mxu0 0.0
  %1457 = vmatprep.subr.mxu0 0.0
  %1458 = vmatpush1.msra.mxu0 0.0
  %1459 = vmatprep.subr.mxu0 0.0
  %1460 = vmatpush1.msra.mxu0 0.0
  %1461 = vmatprep.subr.mxu0 0.0
  %1462 = vmatpush1.msra.mxu0 0.0
  %1463 = vmatprep.subr.mxu0 0.0
  %1464 = vmatpush1.msra.mxu0 0.0
  %1465 = vmatprep.subr.mxu0 0.0
  %1466 = vmatpush1.msra.mxu0 0.0
  %1467 = vmatprep.subr.mxu0 0.0
  %1468 = vmatpush1.msra.mxu0 0.0
  %1469 = vmatprep.subr.mxu0 0.0
  %1470 = vmatpush1.msra.mxu0 0.0
  %1471 = vmatprep.subr.mxu0 0.0
  %1472 = vmatpush1.msra.mxu0 0.0
  %1473 = vmatprep.subr.mxu0 0.0
  %1474 = vmatpush1.msra.mxu0 0.0
  %1475 = vmatprep.subr.mxu0 0.0
  %1476 = vmatpush1.msra.mxu0 0.0
  %1477 = vmatprep.subr.mxu0 0.0
  %1478 = vmatpush1.msra.mxu0 0.0
  %1479 = vmatprep.subr.mxu0 0.0
  %1480 = vmatpush1.msra.mxu0 0.0
  %1481 = vmatprep.subr.mxu0 %v1445
  %1482 = vmatpush1.msra.mxu0 %v1444
  %1483 = vmatprep.subr.mxu0 0.0
  %1484 = vmatpush2.msra.mxu0 0.0
  %1485 = vmatprep.subr.mxu0 0.0
  %1486 = vmatpush2.msra.mxu0 0.0
  %1487 = vmatprep.subr.mxu0 0.0
  %1488 = vmatpush2.msra.mxu0 0.0
  %1489 = vmatprep.subr.mxu0 0.0
  %1490 = vmatpush2.msra.mxu0 0.0
  %1491 = vmatprep.subr.mxu0 0.0
  %1492 = vmatpush2.msra.mxu0 0.0
  %1493 = vmatprep.subr.mxu0 0.0
  %1494 = vmatpush2.msra.mxu0 0.0
  %1495 = vmatprep.subr.mxu0 0.0
  %1496 = vmatpush2.msra.mxu0 0.0
  %1497 = vmatprep.subr.mxu0 0.0
  %1498 = vmatpush2.msra.mxu0 0.0
  %1499 = vmatprep.subr.mxu0 0.0
  %1500 = vmatpush2.msra.mxu0 0.0
  %1501 = vmatprep.subr.mxu0 0.0
  %1502 = vmatpush2.msra.mxu0 0.0
  %1503 = vmatprep.subr.mxu0 0.0
  %1504 = vmatpush2.msra.mxu0 0.0
  %1505 = vmatprep.subr.mxu0 0.0
  %1506 = vmatpush2.msra.mxu0 0.0
  %1507 = vmatprep.subr.mxu0 0.0
  %1508 = vmatpush2.msra.mxu0 0.0
  %1509 = vmatprep.subr.mxu0 0.0
  %1510 = vmatpush2.msra.mxu0 0.0
  %1511 = vmatprep.subr.mxu0 0.0
  %1512 = vmatpush2.msra.mxu0 0.0
  %1513 = vmatprep.subr.mxu0 0.0
  %1514 = vmatpush2.msra.mxu0 0.0
  %1515 = vmatprep.mubr.f32.mxu0 0.0
  %1516 = vmatmul.mubr.f32.gmra.mxu0 %v1449
  %v1517 = vpop.f32.mrf.mxu0
  %v1518 = vadd.f32 0.0, %v1517
  %v1519 = vpop.f32.mrf.mxu0
  %v1520 = vadd.f32 0.0, %v1519
  %1521 = vdwg.mxu0
  %v1522 = vadd.f32 %v1435, %v1518
  %v1523 = vadd.f32 %v1436, %v1520
  %v1524 = vld [vmem:[%s728] sm:$0xff]
  %1525 = vrot.lane.b32.xlu0 %v838, 94
  %v1526 = vpop.permute.xlu0 %1525
  %1527 = vrot.lane.b32.xlu0 %v839, 94
  %v1528 = vpop.permute.xlu0 %1527
  %1529 = vrot.lane.b32.xlu0 %v840, 94
  %v1530 = vpop.permute.xlu0 %1529
  %v1531 = vsel %vm736, %v1526, %v1528
  %v1532 = vsel %vm736, %v1528, %v1530
  %v1536 = vsel %vm45, %v1524, 0
  %1538 = vmatprep.subr.mxu0 0.0
  %1539 = vmatpush1.msra.mxu0 0.0
  %1540 = vmatprep.subr.mxu0 0.0
  %1541 = vmatpush1.msra.mxu0 0.0
  %1542 = vmatprep.subr.mxu0 0.0
  %1543 = vmatpush1.msra.mxu0 0.0
  %1544 = vmatprep.subr.mxu0 0.0
  %1545 = vmatpush1.msra.mxu0 0.0
  %1546 = vmatprep.subr.mxu0 0.0
  %1547 = vmatpush1.msra.mxu0 0.0
  %1548 = vmatprep.subr.mxu0 0.0
  %1549 = vmatpush1.msra.mxu0 0.0
  %1550 = vmatprep.subr.mxu0 0.0
  %1551 = vmatpush1.msra.mxu0 0.0
  %1552 = vmatprep.subr.mxu0 0.0
  %1553 = vmatpush1.msra.mxu0 0.0
  %1554 = vmatprep.subr.mxu0 0.0
  %1555 = vmatpush1.msra.mxu0 0.0
  %1556 = vmatprep.subr.mxu0 0.0
  %1557 = vmatpush1.msra.mxu0 0.0
  %1558 = vmatprep.subr.mxu0 0.0
  %1559 = vmatpush1.msra.mxu0 0.0
  %1560 = vmatprep.subr.mxu0 0.0
  %1561 = vmatpush1.msra.mxu0 0.0
  %1562 = vmatprep.subr.mxu0 0.0
  %1563 = vmatpush1.msra.mxu0 0.0
  %1564 = vmatprep.subr.mxu0 0.0
  %1565 = vmatpush1.msra.mxu0 0.0
  %1566 = vmatprep.subr.mxu0 0.0
  %1567 = vmatpush1.msra.mxu0 0.0
  %1568 = vmatprep.subr.mxu0 %v1532
  %1569 = vmatpush1.msra.mxu0 %v1531
  %1570 = vmatprep.subr.mxu0 0.0
  %1571 = vmatpush2.msra.mxu0 0.0
  %1572 = vmatprep.subr.mxu0 0.0
  %1573 = vmatpush2.msra.mxu0 0.0
  %1574 = vmatprep.subr.mxu0 0.0
  %1575 = vmatpush2.msra.mxu0 0.0
  %1576 = vmatprep.subr.mxu0 0.0
  %1577 = vmatpush2.msra.mxu0 0.0
  %1578 = vmatprep.subr.mxu0 0.0
  %1579 = vmatpush2.msra.mxu0 0.0
  %1580 = vmatprep.subr.mxu0 0.0
  %1581 = vmatpush2.msra.mxu0 0.0
  %1582 = vmatprep.subr.mxu0 0.0
  %1583 = vmatpush2.msra.mxu0 0.0
  %1584 = vmatprep.subr.mxu0 0.0
  %1585 = vmatpush2.msra.mxu0 0.0
  %1586 = vmatprep.subr.mxu0 0.0
  %1587 = vmatpush2.msra.mxu0 0.0
  %1588 = vmatprep.subr.mxu0 0.0
  %1589 = vmatpush2.msra.mxu0 0.0
  %1590 = vmatprep.subr.mxu0 0.0
  %1591 = vmatpush2.msra.mxu0 0.0
  %1592 = vmatprep.subr.mxu0 0.0
  %1593 = vmatpush2.msra.mxu0 0.0
  %1594 = vmatprep.subr.mxu0 0.0
  %1595 = vmatpush2.msra.mxu0 0.0
  %1596 = vmatprep.subr.mxu0 0.0
  %1597 = vmatpush2.msra.mxu0 0.0
  %1598 = vmatprep.subr.mxu0 0.0
  %1599 = vmatpush2.msra.mxu0 0.0
  %1600 = vmatprep.subr.mxu0 0.0
  %1601 = vmatpush2.msra.mxu0 0.0
  %1602 = vmatprep.mubr.f32.mxu0 0.0
  %1603 = vmatmul.mubr.f32.gmra.mxu0 %v1536
  %v1604 = vpop.f32.mrf.mxu0
  %v1605 = vadd.f32 0.0, %v1604
  %v1606 = vpop.f32.mrf.mxu0
  %v1607 = vadd.f32 0.0, %v1606
  %1608 = vdwg.mxu0
  %v1609 = vadd.f32 %v1522, %v1605
  %v1610 = vadd.f32 %v1523, %v1607
  %v1611 = vld [vmem:[%s2] sm:$0xff]
  %1613 = vset.pattern.permute.xlu0 0
  %1614 = vperm.xlu0 %1613, %v1611
  %v1615 = vpop.permute.xlu0 %1614
  %v1617 = vadd.f32 %v1609, %v1615
  %v1618 = vadd.f32 %v1610, %v1615
  %s1619 = scalar_lea.vmem %s3, 16
  %1620 = vst [vmem:[%s1619] sm:$0xff] %v1617
  %1621 = vst [vmem:[%s1619 + $0x8] sm:$0xff] %v1618
  // Predicated region
  $region14: #{rand_concat_conv2d.1} parent=0 // pred_check
    _
  $region15: #{rand_concat_conv2d.1} parent=0 // pred_check_branch
    %1623 = sbr.rel (0) target = $region17
  $region16: #{rand_concat_conv2d.1} parent=0 // pred_region
    _
  $region17: #{rand_concat_conv2d.1} parent=0 // pred_fallthru
    _
  // Predicated region
  $region18: #{rand_concat_conv2d.1} parent=0 // pred_check
    _
  $region19: #{rand_concat_conv2d.1} parent=0 // pred_check_branch
    %1625 = sbr.rel (0) target = $region21
  $region20: #{rand_concat_conv2d.1} parent=0 // pred_region
    _
  $region21: #{rand_concat_conv2d.1} parent=0 // pred_fallthru
    _

</llo_original>
